<compile_context>
chip_gen: v5e
topology: v5e:2x2
jax: 0.10.0
libtpu: 0.0.40
codegen_flags: <defaults>
</compile_context>

<pallas_src>
import functools

import jax
import jax.numpy as jnp
import numpy as np
from jax.experimental import pallas as pl
from jax.experimental.pallas import tpu as pltpu

EPS = 1e-5


def resnet_block3d_kernel(x_ref, w1_ref, w2_ref, g1_ref, bt1_ref, g2_ref, bt2_ref,
                          out_ref, mid_ref, *, D, H, W, C):
    """One batch element per grid step.

    x_ref   : (1, D, H, W*C)   unpadded input, channels-last rows flattened to W*C
    w*_ref  : (9, W*C, W*C)    banded conv weights, one block-banded matrix per
                               (kd, kh); kw taps + W zero-padding live in the band
    g*/bt*_ref : (1, W*C)      IN gamma / beta, pre-tiled across the W lane-blocks
    out_ref : (1, D, H, W*C)
    mid_ref : (D+2, H+2, W*C)  VMEM scratch: D/H zero-padded conv input
    """
    WC = W * C
    M = D * H
    cdt = mid_ref.dtype

    # --- zero only the D/H halo (interior is fully overwritten below).  Done per
    # step (a few rows, ~KBs) so the batch axis can be "parallel" across cores.
    z_d = jnp.zeros((H + 2, WC), cdt)
    mid_ref[0] = z_d
    mid_ref[D + 1] = z_d
    z_h = jnp.zeros((D, 1, WC), cdt)
    mid_ref[1:1 + D, 0:1, :] = z_h
    mid_ref[1:1 + D, H + 1:H + 2, :] = z_h

    x = x_ref[0]                                        # (D, H, WC), f32
    mid_ref[1:1 + D, 1:1 + H, :] = x.astype(cdt)

    def conv(src, band_ref):
        # 9 banded MXU matmuls (one per (kd, kh)); K = N = W*C, lane-dense output.
        # NOTE: the Conv3d bias is an exact no-op under InstanceNorm (it shifts
        # the per-channel mean and cancels), so it is not applied.
        acc = jnp.zeros((M, WC), jnp.float32)
        k = 0
        for kd in range(3):
            for kh in range(3):
                slab = src[kd:kd + D, kh:kh + H, :].reshape(M, WC)
                acc = acc + jnp.dot(slab, band_ref[k],
                                    preferred_element_type=jnp.float32)
                k += 1
        return acc

    def fold_w(v):                                      # (1, WC) -> (1, C)
        s = v[:, 0:C]
        for w in range(1, W):
            s = s + v[:, w * C:(w + 1) * C]
        return s

    def tile_w(v):                                      # (1, C) -> (1, WC)
        return jnp.concatenate([v] * W, axis=1)

    def inst_norm(acc, g_ref, bt_ref):
        # Per-(sample, channel) stats over all D*H*W positions: one traversal of
        # acc for sum / sum-of-squares, then one fused scale+shift pass.
        inv_n = 1.0 / float(M * W)
        s1 = jnp.sum(acc, axis=0, keepdims=True)        # (1, WC)
        s2 = jnp.sum(acc * acc, axis=0, keepdims=True)  # (1, WC)
        mean_c = fold_w(s1) * inv_n                     # (1, C)
        var_c = fold_w(s2) * inv_n - mean_c * mean_c
        inv_c = jax.lax.rsqrt(var_c + EPS)              # EUP
        scale = tile_w(inv_c) * g_ref[...]              # (1, WC)
        shift = bt_ref[...] - tile_w(mean_c * inv_c) * g_ref[...]
        return acc * scale + shift

    # --- conv1 -> IN1 -> ReLU ---
    h1 = inst_norm(conv(mid_ref[...], w1_ref), g1_ref, bt1_ref)
    h1 = jnp.maximum(h1, 0.0)
    mid_ref[1:1 + D, 1:1 + H, :] = h1.reshape(D, H, WC).astype(cdt)

    # --- conv2 -> IN2 ---
    h2 = inst_norm(conv(mid_ref[...], w2_ref), g2_ref, bt2_ref)

    # --- residual add (f32, from the unpadded input block) ---
    out_ref[0] = (x.reshape(M, WC) + h2).reshape(D, H, WC)


def _band_weights(w_oidhw, W, C, dtype):
    """torch Conv3d weight (Cout, Cin, 3, 3, 3) -> 9 block-banded (W*C, W*C) mats.

    Band k = kd*3+kh maps an unpadded input row (W*C features) to an output row
    (W*C features): block (w_in, w_out) holds the (Cin, Cout) tap for
    kw = w_in - w_out + 1 when valid, else 0 (this also implements zero padding
    along W).
    """
    wt = jnp.transpose(jnp.asarray(w_oidhw, jnp.float32),
                       (2, 3, 4, 1, 0))                 # (kd, kh, kw, Cin, Cout)
    band = jnp.zeros((3, 3, W * C, W * C), jnp.float32)
    for kw in range(3):
        for wo in range(W):
            wi = wo + kw - 1
            if 0 <= wi < W:
                band = band.at[:, :, wi * C:(wi + 1) * C,
                               wo * C:(wo + 1) * C].set(wt[:, :, kw])
    return band.reshape(9, W * C, W * C).astype(dtype)


def resnet_block3d(x_ncdhw, params, *, compute_dtype=jnp.float32):
    """x_ncdhw: (N, C, D, H, W) float32; params: torch-shaped tensors."""
    w1, b1, g1, bt1, w2, b2, g2, bt2 = params
    del b1, b2  # conv bias cancels exactly under InstanceNorm (see kernel note)

    x = jnp.transpose(x_ncdhw, (0, 2, 3, 4, 1)).astype(jnp.float32)  # NDHWC
    N, D, H, W, C = x.shape
    WC = W * C
    x_flat = x.reshape(N, D, H, WC)        # lane-dense channels-last rows

    w1b = _band_weights(w1, W, C, compute_dtype)
    w2b = _band_weights(w2, W, C, compute_dtype)
    tile_c = lambda v: jnp.tile(jnp.asarray(v, jnp.float32).reshape(1, C), (1, W))
    g1t, bt1t, g2t, bt2t = tile_c(g1), tile_c(bt1), tile_c(g2), tile_c(bt2)

    def full(shape):
        return pl.BlockSpec(shape, lambda n, _nd=len(shape): (0,) * _nd)

    grid_spec = pltpu.PrefetchScalarGridSpec(
        num_scalar_prefetch=0,
        grid=(N,),
        in_specs=[
            pl.BlockSpec((1, D, H, WC), lambda n: (n, 0, 0, 0)),
            full((9, WC, WC)), full((9, WC, WC)),
            full((1, WC)), full((1, WC)), full((1, WC)), full((1, WC)),
        ],
        out_specs=pl.BlockSpec((1, D, H, WC), lambda n: (n, 0, 0, 0)),
        scratch_shapes=[pltpu.VMEM((D + 2, H + 2, WC), compute_dtype)],
    )

    kern = functools.partial(resnet_block3d_kernel, D=D, H=H, W=W, C=C)
    out = pl.pallas_call(
        kern,
        out_shape=jax.ShapeDtypeStruct((N, D, H, WC), jnp.float32),
        grid_spec=grid_spec,
        compiler_params=pltpu.CompilerParams(
            dimension_semantics=("parallel",),   # batch axis shards across v7x TCs
            vmem_limit_bytes=32 * 1024 * 1024,
        ),
    )(x_flat, w1b, w2b, g1t, bt1t, g2t, bt2t)

    out = out.reshape(N, D, H, W, C)
    return jnp.transpose(out, (0, 4, 1, 2, 3))   # back to NCDHW


def ref_forward(x, params):
    """Pure-JAX reference (NCDHW), mirrors the PyTorch module."""
    w1, b1, g1, bt1, w2, b2, g2, bt2 = params

    def conv(h, w, b):
        out = jax.lax.conv_general_dilated(
            h, w, window_strides=(1, 1, 1), padding=((1, 1),) * 3,
            dimension_numbers=("NCDHW", "OIDHW", "NCDHW"),
            precision=jax.lax.Precision.HIGHEST)
        return out + b.reshape(1, -1, 1, 1, 1)

    def inorm(h, g, bt):
        mean = jnp.mean(h, axis=(2, 3, 4), keepdims=True)
        var = jnp.mean(jnp.square(h - mean), axis=(2, 3, 4), keepdims=True)
        return ((h - mean) * jax.lax.rsqrt(var + EPS)
                * g.reshape(1, -1, 1, 1, 1) + bt.reshape(1, -1, 1, 1, 1))

    h = jax.nn.relu(inorm(conv(x, w1, b1), g1, bt1))
    h = inorm(conv(h, w2, b2), g2, bt2)
    return x + h


if __name__ == "__main__":
    N, C, D, H, W = 2, 16, 8, 8, 8   # dim = 16; W*C = 128 (lane-dense)

    key = jax.random.PRNGKey(0)
    kx, k1, k2, k3, k4, k5, k6 = jax.random.split(key, 7)

    x = jax.random.normal(kx, (N, C, D, H, W), jnp.float32)

    w1 = 0.05 * jax.random.normal(k1, (C, C, 3, 3, 3), jnp.float32)
    b1 = 0.05 * jax.random.normal(k2, (C,), jnp.float32)
    w2 = 0.05 * jax.random.normal(k3, (C, C, 3, 3, 3), jnp.float32)
    b2 = 0.05 * jax.random.normal(k4, (C,), jnp.float32)
    g1 = 1.0 + 0.1 * jax.random.normal(k5, (C,), jnp.float32)
    bt1 = 0.1 * jax.random.normal(k6, (C,), jnp.float32)
    g2 = jnp.ones((C,), jnp.float32)
    bt2 = jnp.zeros((C,), jnp.float32)

    params = (w1, b1, g1, bt1, w2, b2, g2, bt2)

    out = resnet_block3d(x, params)
    out = jax.block_until_ready(out)

    ref = jax.block_until_ready(ref_forward(x, params))
    np.testing.assert_allclose(np.asarray(out), np.asarray(ref),
                               rtol=1e-2, atol=1e-2)

    print("KERNEL_OK")
</pallas_src>

<mosaic_0001>
module attributes {stable_mosaic.version = 11 : i64} {
  func.func @resnet_block3d_kernel(%arg0: i32, %arg1: memref<1x8x8x128xf32, #tpu.memory_space<vmem>>, %arg2: memref<9x128x128xf32, #tpu.memory_space<vmem>>, %arg3: memref<9x128x128xf32, #tpu.memory_space<vmem>>, %arg4: memref<1x128xf32, #tpu.memory_space<vmem>>, %arg5: memref<1x128xf32, #tpu.memory_space<vmem>>, %arg6: memref<1x128xf32, #tpu.memory_space<vmem>>, %arg7: memref<1x128xf32, #tpu.memory_space<vmem>>, %arg8: memref<1x8x8x128xf32, #tpu.memory_space<vmem>>, %arg9: memref<10x10x128xf32, #tpu.memory_space<vmem>>) attributes {dimension_semantics = [#tpu.dimension_semantics<parallel>], iteration_bounds = array<i64: 2>, scalar_prefetch = 0 : i64, scratch_operands = 1 : i64, tpu.core_type = #tpu.core_type<tc>, window_params = [{transform_indices = @transform_0, window_bounds = array<i64: 1, 8, 8, 128>}, {pipeline_mode = #tpu.pipeline_mode<synchronous>, transform_indices = @transform_1, window_bounds = array<i64: 9, 128, 128>}, {pipeline_mode = #tpu.pipeline_mode<synchronous>, transform_indices = @transform_2, window_bounds = array<i64: 9, 128, 128>}, {pipeline_mode = #tpu.pipeline_mode<synchronous>, transform_indices = @transform_3, window_bounds = array<i64: 1, 128>}, {pipeline_mode = #tpu.pipeline_mode<synchronous>, transform_indices = @transform_4, window_bounds = array<i64: 1, 128>}, {pipeline_mode = #tpu.pipeline_mode<synchronous>, transform_indices = @transform_5, window_bounds = array<i64: 1, 128>}, {pipeline_mode = #tpu.pipeline_mode<synchronous>, transform_indices = @transform_6, window_bounds = array<i64: 1, 128>}, {transform_indices = @transform_7, window_bounds = array<i64: 1, 8, 8, 128>}]} {
    %cst = arith.constant 0.000000e+00 : f32
    %0 = vector.broadcast %cst : f32 to vector<10x128xf32>
    %c0 = arith.constant 0 : index
    %c0_0 = arith.constant 0 : index
    %c0_1 = arith.constant 0 : index
    %1 = vector.load %arg9[%c0, %c0_0, %c0_1] : memref<10x10x128xf32, #tpu.memory_space<vmem>>, vector<1x10x128xf32>
    %2 = vector.shape_cast %1 : vector<1x10x128xf32> to vector<10x128xf32>
    %3 = vector.shape_cast %0 : vector<10x128xf32> to vector<1x10x128xf32>
    tpu.vector_store %arg9[%c0, %c0_0, %c0_1], %3 {strides = array<i32>} : memref<10x10x128xf32, #tpu.memory_space<vmem>>, vector<1x10x128xf32>,
    %c9 = arith.constant 9 : index
    %c0_2 = arith.constant 0 : index
    %c0_3 = arith.constant 0 : index
    %4 = vector.load %arg9[%c9, %c0_2, %c0_3] : memref<10x10x128xf32, #tpu.memory_space<vmem>>, vector<1x10x128xf32>
    %5 = vector.shape_cast %4 : vector<1x10x128xf32> to vector<10x128xf32>
    %6 = vector.shape_cast %0 : vector<10x128xf32> to vector<1x10x128xf32>
    tpu.vector_store %arg9[%c9, %c0_2, %c0_3], %6 {strides = array<i32>} : memref<10x10x128xf32, #tpu.memory_space<vmem>>, vector<1x10x128xf32>,
    %cst_4 = arith.constant 0.000000e+00 : f32
    %7 = vector.broadcast %cst_4 : f32 to vector<8x1x128xf32>
    %c1 = arith.constant 1 : index
    %c0_5 = arith.constant 0 : index
    %c0_6 = arith.constant 0 : index
    %8 = vector.load %arg9[%c1, %c0_5, %c0_6] : memref<10x10x128xf32, #tpu.memory_space<vmem>>, vector<8x1x128xf32>
    tpu.vector_store %arg9[%c1, %c0_5, %c0_6], %7 {strides = array<i32>} : memref<10x10x128xf32, #tpu.memory_space<vmem>>, vector<8x1x128xf32>,
    %c1_7 = arith.constant 1 : index
    %c9_8 = arith.constant 9 : index
    %c0_9 = arith.constant 0 : index
    %9 = vector.load %arg9[%c1_7, %c9_8, %c0_9] : memref<10x10x128xf32, #tpu.memory_space<vmem>>, vector<8x1x128xf32>
    tpu.vector_store %arg9[%c1_7, %c9_8, %c0_9], %7 {strides = array<i32>} : memref<10x10x128xf32, #tpu.memory_space<vmem>>, vector<8x1x128xf32>,
    %c0_10 = arith.constant 0 : index
    %c0_11 = arith.constant 0 : index
    %c0_12 = arith.constant 0 : index
    %c0_13 = arith.constant 0 : index
    %10 = vector.load %arg1[%c0_10, %c0_11, %c0_12, %c0_13] : memref<1x8x8x128xf32, #tpu.memory_space<vmem>>, vector<1x8x8x128xf32>
    %11 = vector.shape_cast %10 : vector<1x8x8x128xf32> to vector<8x8x128xf32>
    %c1_14 = arith.constant 1 : index
    %c1_15 = arith.constant 1 : index
    %c0_16 = arith.constant 0 : index
    %12 = vector.load %arg9[%c1_14, %c1_15, %c0_16] : memref<10x10x128xf32, #tpu.memory_space<vmem>>, vector<8x8x128xf32>
    tpu.vector_store %arg9[%c1_14, %c1_15, %c0_16], %11 {strides = array<i32>} : memref<10x10x128xf32, #tpu.memory_space<vmem>>, vector<8x8x128xf32>,
    %c0_17 = arith.constant 0 : index
    %c0_18 = arith.constant 0 : index
    %c0_19 = arith.constant 0 : index
    %13 = vector.load %arg9[%c0_17, %c0_18, %c0_19] : memref<10x10x128xf32, #tpu.memory_space<vmem>>, vector<10x10x128xf32>
    %cst_20 = arith.constant 0.000000e+00 : f32
    %14 = vector.broadcast %cst_20 : f32 to vector<64x128xf32>
    %15 = vector.extract_strided_slice %13 {offsets = [0, 0, 0], sizes = [8, 8, 128], strides = [1, 1, 1]} : vector<10x10x128xf32> to vector<8x8x128xf32>
    %16 = vector.shape_cast %15 : vector<8x8x128xf32> to vector<64x128xf32>
    %c0_21 = arith.constant 0 : index
    %c0_22 = arith.constant 0 : index
    %c0_23 = arith.constant 0 : index
    %17 = vector.load %arg2[%c0_21, %c0_22, %c0_23] : memref<9x128x128xf32, #tpu.memory_space<vmem>>, vector<1x128x128xf32>
    %18 = vector.shape_cast %17 : vector<1x128x128xf32> to vector<128x128xf32>
    %cst_24 = arith.constant dense<0.000000e+00> : vector<64x128xf32>
    %19 = tpu.matmul %16, %18, %cst_24 {dimension_numbers = #tpu.dot_dimension_numbers<[1], [0], [0], [1], [0, 0, 1, 1], [], []>} : vector<64x128xf32>, vector<128x128xf32>, vector<64x128xf32> -> vector<64x128xf32>
    %20 = arith.addf %14, %19 : vector<64x128xf32>
    %21 = vector.extract_strided_slice %13 {offsets = [0, 1, 0], sizes = [8, 8, 128], strides = [1, 1, 1]} : vector<10x10x128xf32> to vector<8x8x128xf32>
    %22 = vector.shape_cast %21 : vector<8x8x128xf32> to vector<64x128xf32>
    %c1_25 = arith.constant 1 : index
    %c0_26 = arith.constant 0 : index
    %c0_27 = arith.constant 0 : index
    %23 = vector.load %arg2[%c1_25, %c0_26, %c0_27] : memref<9x128x128xf32, #tpu.memory_space<vmem>>, vector<1x128x128xf32>
    %24 = vector.shape_cast %23 : vector<1x128x128xf32> to vector<128x128xf32>
    %cst_28 = arith.constant dense<0.000000e+00> : vector<64x128xf32>
    %25 = tpu.matmul %22, %24, %cst_28 {dimension_numbers = #tpu.dot_dimension_numbers<[1], [0], [0], [1], [0, 0, 1, 1], [], []>} : vector<64x128xf32>, vector<128x128xf32>, vector<64x128xf32> -> vector<64x128xf32>
    %26 = arith.addf %20, %25 : vector<64x128xf32>
    %27 = vector.extract_strided_slice %13 {offsets = [0, 2, 0], sizes = [8, 8, 128], strides = [1, 1, 1]} : vector<10x10x128xf32> to vector<8x8x128xf32>
    %28 = vector.shape_cast %27 : vector<8x8x128xf32> to vector<64x128xf32>
    %c2 = arith.constant 2 : index
    %c0_29 = arith.constant 0 : index
    %c0_30 = arith.constant 0 : index
    %29 = vector.load %arg2[%c2, %c0_29, %c0_30] : memref<9x128x128xf32, #tpu.memory_space<vmem>>, vector<1x128x128xf32>
    %30 = vector.shape_cast %29 : vector<1x128x128xf32> to vector<128x128xf32>
    %cst_31 = arith.constant dense<0.000000e+00> : vector<64x128xf32>
    %31 = tpu.matmul %28, %30, %cst_31 {dimension_numbers = #tpu.dot_dimension_numbers<[1], [0], [0], [1], [0, 0, 1, 1], [], []>} : vector<64x128xf32>, vector<128x128xf32>, vector<64x128xf32> -> vector<64x128xf32>
    %32 = arith.addf %26, %31 : vector<64x128xf32>
    %33 = vector.extract_strided_slice %13 {offsets = [1, 0, 0], sizes = [8, 8, 128], strides = [1, 1, 1]} : vector<10x10x128xf32> to vector<8x8x128xf32>
    %34 = vector.shape_cast %33 : vector<8x8x128xf32> to vector<64x128xf32>
    %c3 = arith.constant 3 : index
    %c0_32 = arith.constant 0 : index
    %c0_33 = arith.constant 0 : index
    %35 = vector.load %arg2[%c3, %c0_32, %c0_33] : memref<9x128x128xf32, #tpu.memory_space<vmem>>, vector<1x128x128xf32>
    %36 = vector.shape_cast %35 : vector<1x128x128xf32> to vector<128x128xf32>
    %cst_34 = arith.constant dense<0.000000e+00> : vector<64x128xf32>
    %37 = tpu.matmul %34, %36, %cst_34 {dimension_numbers = #tpu.dot_dimension_numbers<[1], [0], [0], [1], [0, 0, 1, 1], [], []>} : vector<64x128xf32>, vector<128x128xf32>, vector<64x128xf32> -> vector<64x128xf32>
    %38 = arith.addf %32, %37 : vector<64x128xf32>
    %39 = vector.extract_strided_slice %13 {offsets = [1, 1, 0], sizes = [8, 8, 128], strides = [1, 1, 1]} : vector<10x10x128xf32> to vector<8x8x128xf32>
    %40 = vector.shape_cast %39 : vector<8x8x128xf32> to vector<64x128xf32>
    %c4 = arith.constant 4 : index
    %c0_35 = arith.constant 0 : index
    %c0_36 = arith.constant 0 : index
    %41 = vector.load %arg2[%c4, %c0_35, %c0_36] : memref<9x128x128xf32, #tpu.memory_space<vmem>>, vector<1x128x128xf32>
    %42 = vector.shape_cast %41 : vector<1x128x128xf32> to vector<128x128xf32>
    %cst_37 = arith.constant dense<0.000000e+00> : vector<64x128xf32>
    %43 = tpu.matmul %40, %42, %cst_37 {dimension_numbers = #tpu.dot_dimension_numbers<[1], [0], [0], [1], [0, 0, 1, 1], [], []>} : vector<64x128xf32>, vector<128x128xf32>, vector<64x128xf32> -> vector<64x128xf32>
    %44 = arith.addf %38, %43 : vector<64x128xf32>
    %45 = vector.extract_strided_slice %13 {offsets = [1, 2, 0], sizes = [8, 8, 128], strides = [1, 1, 1]} : vector<10x10x128xf32> to vector<8x8x128xf32>
    %46 = vector.shape_cast %45 : vector<8x8x128xf32> to vector<64x128xf32>
    %c5 = arith.constant 5 : index
    %c0_38 = arith.constant 0 : index
    %c0_39 = arith.constant 0 : index
    %47 = vector.load %arg2[%c5, %c0_38, %c0_39] : memref<9x128x128xf32, #tpu.memory_space<vmem>>, vector<1x128x128xf32>
    %48 = vector.shape_cast %47 : vector<1x128x128xf32> to vector<128x128xf32>
    %cst_40 = arith.constant dense<0.000000e+00> : vector<64x128xf32>
    %49 = tpu.matmul %46, %48, %cst_40 {dimension_numbers = #tpu.dot_dimension_numbers<[1], [0], [0], [1], [0, 0, 1, 1], [], []>} : vector<64x128xf32>, vector<128x128xf32>, vector<64x128xf32> -> vector<64x128xf32>
    %50 = arith.addf %44, %49 : vector<64x128xf32>
    %51 = vector.extract_strided_slice %13 {offsets = [2, 0, 0], sizes = [8, 8, 128], strides = [1, 1, 1]} : vector<10x10x128xf32> to vector<8x8x128xf32>
    %52 = vector.shape_cast %51 : vector<8x8x128xf32> to vector<64x128xf32>
    %c6 = arith.constant 6 : index
    %c0_41 = arith.constant 0 : index
    %c0_42 = arith.constant 0 : index
    %53 = vector.load %arg2[%c6, %c0_41, %c0_42] : memref<9x128x128xf32, #tpu.memory_space<vmem>>, vector<1x128x128xf32>
    %54 = vector.shape_cast %53 : vector<1x128x128xf32> to vector<128x128xf32>
    %cst_43 = arith.constant dense<0.000000e+00> : vector<64x128xf32>
    %55 = tpu.matmul %52, %54, %cst_43 {dimension_numbers = #tpu.dot_dimension_numbers<[1], [0], [0], [1], [0, 0, 1, 1], [], []>} : vector<64x128xf32>, vector<128x128xf32>, vector<64x128xf32> -> vector<64x128xf32>
    %56 = arith.addf %50, %55 : vector<64x128xf32>
    %57 = vector.extract_strided_slice %13 {offsets = [2, 1, 0], sizes = [8, 8, 128], strides = [1, 1, 1]} : vector<10x10x128xf32> to vector<8x8x128xf32>
    %58 = vector.shape_cast %57 : vector<8x8x128xf32> to vector<64x128xf32>
    %c7 = arith.constant 7 : index
    %c0_44 = arith.constant 0 : index
    %c0_45 = arith.constant 0 : index
    %59 = vector.load %arg2[%c7, %c0_44, %c0_45] : memref<9x128x128xf32, #tpu.memory_space<vmem>>, vector<1x128x128xf32>
    %60 = vector.shape_cast %59 : vector<1x128x128xf32> to vector<128x128xf32>
    %cst_46 = arith.constant dense<0.000000e+00> : vector<64x128xf32>
    %61 = tpu.matmul %58, %60, %cst_46 {dimension_numbers = #tpu.dot_dimension_numbers<[1], [0], [0], [1], [0, 0, 1, 1], [], []>} : vector<64x128xf32>, vector<128x128xf32>, vector<64x128xf32> -> vector<64x128xf32>
    %62 = arith.addf %56, %61 : vector<64x128xf32>
    %63 = vector.extract_strided_slice %13 {offsets = [2, 2, 0], sizes = [8, 8, 128], strides = [1, 1, 1]} : vector<10x10x128xf32> to vector<8x8x128xf32>
    %64 = vector.shape_cast %63 : vector<8x8x128xf32> to vector<64x128xf32>
    %c8 = arith.constant 8 : index
    %c0_47 = arith.constant 0 : index
    %c0_48 = arith.constant 0 : index
    %65 = vector.load %arg2[%c8, %c0_47, %c0_48] : memref<9x128x128xf32, #tpu.memory_space<vmem>>, vector<1x128x128xf32>
    %66 = vector.shape_cast %65 : vector<1x128x128xf32> to vector<128x128xf32>
    %cst_49 = arith.constant dense<0.000000e+00> : vector<64x128xf32>
    %67 = tpu.matmul %64, %66, %cst_49 {dimension_numbers = #tpu.dot_dimension_numbers<[1], [0], [0], [1], [0, 0, 1, 1], [], []>} : vector<64x128xf32>, vector<128x128xf32>, vector<64x128xf32> -> vector<64x128xf32>
    %68 = arith.addf %62, %67 : vector<64x128xf32>
    %cst_50 = arith.constant dense<0.000000e+00> : vector<128xf32>
    %69 = vector.multi_reduction <add>, %68, %cst_50 [0] : vector<64x128xf32> to vector<128xf32>
    %70 = vector.shape_cast %69 : vector<128xf32> to vector<1x128xf32>
    %71 = arith.mulf %68, %68 : vector<64x128xf32>
    %cst_51 = arith.constant dense<0.000000e+00> : vector<128xf32>
    %72 = vector.multi_reduction <add>, %71, %cst_51 [0] : vector<64x128xf32> to vector<128xf32>
    %73 = vector.shape_cast %72 : vector<128xf32> to vector<1x128xf32>
    %74 = vector.extract_strided_slice %70 {offsets = [0, 0], sizes = [1, 16], strides = [1, 1]} : vector<1x128xf32> to vector<1x16xf32>
    %75 = vector.extract_strided_slice %70 {offsets = [0, 16], sizes = [1, 16], strides = [1, 1]} : vector<1x128xf32> to vector<1x16xf32>
    %76 = arith.addf %74, %75 : vector<1x16xf32>
    %77 = vector.extract_strided_slice %70 {offsets = [0, 32], sizes = [1, 16], strides = [1, 1]} : vector<1x128xf32> to vector<1x16xf32>
    %78 = arith.addf %76, %77 : vector<1x16xf32>
    %79 = vector.extract_strided_slice %70 {offsets = [0, 48], sizes = [1, 16], strides = [1, 1]} : vector<1x128xf32> to vector<1x16xf32>
    %80 = arith.addf %78, %79 : vector<1x16xf32>
    %81 = vector.extract_strided_slice %70 {offsets = [0, 64], sizes = [1, 16], strides = [1, 1]} : vector<1x128xf32> to vector<1x16xf32>
    %82 = arith.addf %80, %81 : vector<1x16xf32>
    %83 = vector.extract_strided_slice %70 {offsets = [0, 80], sizes = [1, 16], strides = [1, 1]} : vector<1x128xf32> to vector<1x16xf32>
    %84 = arith.addf %82, %83 : vector<1x16xf32>
    %85 = vector.extract_strided_slice %70 {offsets = [0, 96], sizes = [1, 16], strides = [1, 1]} : vector<1x128xf32> to vector<1x16xf32>
    %86 = arith.addf %84, %85 : vector<1x16xf32>
    %87 = vector.extract_strided_slice %70 {offsets = [0, 112], sizes = [1, 16], strides = [1, 1]} : vector<1x128xf32> to vector<1x16xf32>
    %88 = arith.addf %86, %87 : vector<1x16xf32>
    %cst_52 = arith.constant 0.001953125 : f32
    %89 = vector.broadcast %cst_52 : f32 to vector<1x16xf32>
    %90 = arith.mulf %88, %89 : vector<1x16xf32>
    %91 = vector.extract_strided_slice %73 {offsets = [0, 0], sizes = [1, 16], strides = [1, 1]} : vector<1x128xf32> to vector<1x16xf32>
    %92 = vector.extract_strided_slice %73 {offsets = [0, 16], sizes = [1, 16], strides = [1, 1]} : vector<1x128xf32> to vector<1x16xf32>
    %93 = arith.addf %91, %92 : vector<1x16xf32>
    %94 = vector.extract_strided_slice %73 {offsets = [0, 32], sizes = [1, 16], strides = [1, 1]} : vector<1x128xf32> to vector<1x16xf32>
    %95 = arith.addf %93, %94 : vector<1x16xf32>
    %96 = vector.extract_strided_slice %73 {offsets = [0, 48], sizes = [1, 16], strides = [1, 1]} : vector<1x128xf32> to vector<1x16xf32>
    %97 = arith.addf %95, %96 : vector<1x16xf32>
    %98 = vector.extract_strided_slice %73 {offsets = [0, 64], sizes = [1, 16], strides = [1, 1]} : vector<1x128xf32> to vector<1x16xf32>
    %99 = arith.addf %97, %98 : vector<1x16xf32>
    %100 = vector.extract_strided_slice %73 {offsets = [0, 80], sizes = [1, 16], strides = [1, 1]} : vector<1x128xf32> to vector<1x16xf32>
    %101 = arith.addf %99, %100 : vector<1x16xf32>
    %102 = vector.extract_strided_slice %73 {offsets = [0, 96], sizes = [1, 16], strides = [1, 1]} : vector<1x128xf32> to vector<1x16xf32>
    %103 = arith.addf %101, %102 : vector<1x16xf32>
    %104 = vector.extract_strided_slice %73 {offsets = [0, 112], sizes = [1, 16], strides = [1, 1]} : vector<1x128xf32> to vector<1x16xf32>
    %105 = arith.addf %103, %104 : vector<1x16xf32>
    %cst_53 = arith.constant 0.001953125 : f32
    %106 = vector.broadcast %cst_53 : f32 to vector<1x16xf32>
    %107 = arith.mulf %105, %106 : vector<1x16xf32>
    %108 = arith.mulf %90, %90 : vector<1x16xf32>
    %109 = arith.subf %107, %108 : vector<1x16xf32>
    %cst_54 = arith.constant 9.99999974E-6 : f32
    %110 = vector.broadcast %cst_54 : f32 to vector<1x16xf32>
    %111 = arith.addf %109, %110 : vector<1x16xf32>
    %112 = math.rsqrt %111 : vector<1x16xf32>
    %113 = tpu.concatenate %112, %112, %112, %112, %112, %112, %112, %112 in 1 : vector<1x16xf32>, vector<1x16xf32>, vector<1x16xf32>, vector<1x16xf32>, vector<1x16xf32>, vector<1x16xf32>, vector<1x16xf32>, vector<1x16xf32> -> vector<1x128xf32>
    %c0_55 = arith.constant 0 : index
    %c0_56 = arith.constant 0 : index
    %114 = vector.load %arg4[%c0_55, %c0_56] : memref<1x128xf32, #tpu.memory_space<vmem>>, vector<1x128xf32>
    %115 = arith.mulf %113, %114 : vector<1x128xf32>
    %c0_57 = arith.constant 0 : index
    %c0_58 = arith.constant 0 : index
    %116 = vector.load %arg5[%c0_57, %c0_58] : memref<1x128xf32, #tpu.memory_space<vmem>>, vector<1x128xf32>
    %117 = arith.mulf %90, %112 : vector<1x16xf32>
    %118 = tpu.concatenate %117, %117, %117, %117, %117, %117, %117, %117 in 1 : vector<1x16xf32>, vector<1x16xf32>, vector<1x16xf32>, vector<1x16xf32>, vector<1x16xf32>, vector<1x16xf32>, vector<1x16xf32>, vector<1x16xf32> -> vector<1x128xf32>
    %c0_59 = arith.constant 0 : index
    %c0_60 = arith.constant 0 : index
    %119 = vector.load %arg4[%c0_59, %c0_60] : memref<1x128xf32, #tpu.memory_space<vmem>>, vector<1x128xf32>
    %120 = arith.mulf %118, %119 : vector<1x128xf32>
    %121 = arith.subf %116, %120 : vector<1x128xf32>
    %122 = vector.broadcast %115 : vector<1x128xf32> to vector<64x128xf32>
    %123 = arith.mulf %68, %122 : vector<64x128xf32>
    %124 = vector.broadcast %121 : vector<1x128xf32> to vector<64x128xf32>
    %125 = arith.addf %123, %124 : vector<64x128xf32>
    %cst_61 = arith.constant 0.000000e+00 : f32
    %126 = vector.broadcast %cst_61 : f32 to vector<64x128xf32>
    %127 = arith.maximumf %125, %126 : vector<64x128xf32>
    %128 = vector.shape_cast %127 : vector<64x128xf32> to vector<8x8x128xf32>
    %c1_62 = arith.constant 1 : index
    %c1_63 = arith.constant 1 : index
    %c0_64 = arith.constant 0 : index
    %129 = vector.load %arg9[%c1_62, %c1_63, %c0_64] : memref<10x10x128xf32, #tpu.memory_space<vmem>>, vector<8x8x128xf32>
    tpu.vector_store %arg9[%c1_62, %c1_63, %c0_64], %128 {strides = array<i32>} : memref<10x10x128xf32, #tpu.memory_space<vmem>>, vector<8x8x128xf32>,
    %c0_65 = arith.constant 0 : index
    %c0_66 = arith.constant 0 : index
    %c0_67 = arith.constant 0 : index
    %130 = vector.load %arg9[%c0_65, %c0_66, %c0_67] : memref<10x10x128xf32, #tpu.memory_space<vmem>>, vector<10x10x128xf32>
    %cst_68 = arith.constant 0.000000e+00 : f32
    %131 = vector.broadcast %cst_68 : f32 to vector<64x128xf32>
    %132 = vector.extract_strided_slice %130 {offsets = [0, 0, 0], sizes = [8, 8, 128], strides = [1, 1, 1]} : vector<10x10x128xf32> to vector<8x8x128xf32>
    %133 = vector.shape_cast %132 : vector<8x8x128xf32> to vector<64x128xf32>
    %c0_69 = arith.constant 0 : index
    %c0_70 = arith.constant 0 : index
    %c0_71 = arith.constant 0 : index
    %134 = vector.load %arg3[%c0_69, %c0_70, %c0_71] : memref<9x128x128xf32, #tpu.memory_space<vmem>>, vector<1x128x128xf32>
    %135 = vector.shape_cast %134 : vector<1x128x128xf32> to vector<128x128xf32>
    %cst_72 = arith.constant dense<0.000000e+00> : vector<64x128xf32>
    %136 = tpu.matmul %133, %135, %cst_72 {dimension_numbers = #tpu.dot_dimension_numbers<[1], [0], [0], [1], [0, 0, 1, 1], [], []>} : vector<64x128xf32>, vector<128x128xf32>, vector<64x128xf32> -> vector<64x128xf32>
    %137 = arith.addf %131, %136 : vector<64x128xf32>
    %138 = vector.extract_strided_slice %130 {offsets = [0, 1, 0], sizes = [8, 8, 128], strides = [1, 1, 1]} : vector<10x10x128xf32> to vector<8x8x128xf32>
    %139 = vector.shape_cast %138 : vector<8x8x128xf32> to vector<64x128xf32>
    %c1_73 = arith.constant 1 : index
    %c0_74 = arith.constant 0 : index
    %c0_75 = arith.constant 0 : index
    %140 = vector.load %arg3[%c1_73, %c0_74, %c0_75] : memref<9x128x128xf32, #tpu.memory_space<vmem>>, vector<1x128x128xf32>
    %141 = vector.shape_cast %140 : vector<1x128x128xf32> to vector<128x128xf32>
    %cst_76 = arith.constant dense<0.000000e+00> : vector<64x128xf32>
    %142 = tpu.matmul %139, %141, %cst_76 {dimension_numbers = #tpu.dot_dimension_numbers<[1], [0], [0], [1], [0, 0, 1, 1], [], []>} : vector<64x128xf32>, vector<128x128xf32>, vector<64x128xf32> -> vector<64x128xf32>
    %143 = arith.addf %137, %142 : vector<64x128xf32>
    %144 = vector.extract_strided_slice %130 {offsets = [0, 2, 0], sizes = [8, 8, 128], strides = [1, 1, 1]} : vector<10x10x128xf32> to vector<8x8x128xf32>
    %145 = vector.shape_cast %144 : vector<8x8x128xf32> to vector<64x128xf32>
    %c2_77 = arith.constant 2 : index
    %c0_78 = arith.constant 0 : index
    %c0_79 = arith.constant 0 : index
    %146 = vector.load %arg3[%c2_77, %c0_78, %c0_79] : memref<9x128x128xf32, #tpu.memory_space<vmem>>, vector<1x128x128xf32>
    %147 = vector.shape_cast %146 : vector<1x128x128xf32> to vector<128x128xf32>
    %cst_80 = arith.constant dense<0.000000e+00> : vector<64x128xf32>
    %148 = tpu.matmul %145, %147, %cst_80 {dimension_numbers = #tpu.dot_dimension_numbers<[1], [0], [0], [1], [0, 0, 1, 1], [], []>} : vector<64x128xf32>, vector<128x128xf32>, vector<64x128xf32> -> vector<64x128xf32>
    %149 = arith.addf %143, %148 : vector<64x128xf32>
    %150 = vector.extract_strided_slice %130 {offsets = [1, 0, 0], sizes = [8, 8, 128], strides = [1, 1, 1]} : vector<10x10x128xf32> to vector<8x8x128xf32>
    %151 = vector.shape_cast %150 : vector<8x8x128xf32> to vector<64x128xf32>
    %c3_81 = arith.constant 3 : index
    %c0_82 = arith.constant 0 : index
    %c0_83 = arith.constant 0 : index
    %152 = vector.load %arg3[%c3_81, %c0_82, %c0_83] : memref<9x128x128xf32, #tpu.memory_space<vmem>>, vector<1x128x128xf32>
    %153 = vector.shape_cast %152 : vector<1x128x128xf32> to vector<128x128xf32>
    %cst_84 = arith.constant dense<0.000000e+00> : vector<64x128xf32>
    %154 = tpu.matmul %151, %153, %cst_84 {dimension_numbers = #tpu.dot_dimension_numbers<[1], [0], [0], [1], [0, 0, 1, 1], [], []>} : vector<64x128xf32>, vector<128x128xf32>, vector<64x128xf32> -> vector<64x128xf32>
    %155 = arith.addf %149, %154 : vector<64x128xf32>
    %156 = vector.extract_strided_slice %130 {offsets = [1, 1, 0], sizes = [8, 8, 128], strides = [1, 1, 1]} : vector<10x10x128xf32> to vector<8x8x128xf32>
    %157 = vector.shape_cast %156 : vector<8x8x128xf32> to vector<64x128xf32>
    %c4_85 = arith.constant 4 : index
    %c0_86 = arith.constant 0 : index
    %c0_87 = arith.constant 0 : index
    %158 = vector.load %arg3[%c4_85, %c0_86, %c0_87] : memref<9x128x128xf32, #tpu.memory_space<vmem>>, vector<1x128x128xf32>
    %159 = vector.shape_cast %158 : vector<1x128x128xf32> to vector<128x128xf32>
    %cst_88 = arith.constant dense<0.000000e+00> : vector<64x128xf32>
    %160 = tpu.matmul %157, %159, %cst_88 {dimension_numbers = #tpu.dot_dimension_numbers<[1], [0], [0], [1], [0, 0, 1, 1], [], []>} : vector<64x128xf32>, vector<128x128xf32>, vector<64x128xf32> -> vector<64x128xf32>
    %161 = arith.addf %155, %160 : vector<64x128xf32>
    %162 = vector.extract_strided_slice %130 {offsets = [1, 2, 0], sizes = [8, 8, 128], strides = [1, 1, 1]} : vector<10x10x128xf32> to vector<8x8x128xf32>
    %163 = vector.shape_cast %162 : vector<8x8x128xf32> to vector<64x128xf32>
    %c5_89 = arith.constant 5 : index
    %c0_90 = arith.constant 0 : index
    %c0_91 = arith.constant 0 : index
    %164 = vector.load %arg3[%c5_89, %c0_90, %c0_91] : memref<9x128x128xf32, #tpu.memory_space<vmem>>, vector<1x128x128xf32>
    %165 = vector.shape_cast %164 : vector<1x128x128xf32> to vector<128x128xf32>
    %cst_92 = arith.constant dense<0.000000e+00> : vector<64x128xf32>
    %166 = tpu.matmul %163, %165, %cst_92 {dimension_numbers = #tpu.dot_dimension_numbers<[1], [0], [0], [1], [0, 0, 1, 1], [], []>} : vector<64x128xf32>, vector<128x128xf32>, vector<64x128xf32> -> vector<64x128xf32>
    %167 = arith.addf %161, %166 : vector<64x128xf32>
    %168 = vector.extract_strided_slice %130 {offsets = [2, 0, 0], sizes = [8, 8, 128], strides = [1, 1, 1]} : vector<10x10x128xf32> to vector<8x8x128xf32>
    %169 = vector.shape_cast %168 : vector<8x8x128xf32> to vector<64x128xf32>
    %c6_93 = arith.constant 6 : index
    %c0_94 = arith.constant 0 : index
    %c0_95 = arith.constant 0 : index
    %170 = vector.load %arg3[%c6_93, %c0_94, %c0_95] : memref<9x128x128xf32, #tpu.memory_space<vmem>>, vector<1x128x128xf32>
    %171 = vector.shape_cast %170 : vector<1x128x128xf32> to vector<128x128xf32>
    %cst_96 = arith.constant dense<0.000000e+00> : vector<64x128xf32>
    %172 = tpu.matmul %169, %171, %cst_96 {dimension_numbers = #tpu.dot_dimension_numbers<[1], [0], [0], [1], [0, 0, 1, 1], [], []>} : vector<64x128xf32>, vector<128x128xf32>, vector<64x128xf32> -> vector<64x128xf32>
    %173 = arith.addf %167, %172 : vector<64x128xf32>
    %174 = vector.extract_strided_slice %130 {offsets = [2, 1, 0], sizes = [8, 8, 128], strides = [1, 1, 1]} : vector<10x10x128xf32> to vector<8x8x128xf32>
    %175 = vector.shape_cast %174 : vector<8x8x128xf32> to vector<64x128xf32>
    %c7_97 = arith.constant 7 : index
    %c0_98 = arith.constant 0 : index
    %c0_99 = arith.constant 0 : index
    %176 = vector.load %arg3[%c7_97, %c0_98, %c0_99] : memref<9x128x128xf32, #tpu.memory_space<vmem>>, vector<1x128x128xf32>
    %177 = vector.shape_cast %176 : vector<1x128x128xf32> to vector<128x128xf32>
    %cst_100 = arith.constant dense<0.000000e+00> : vector<64x128xf32>
    %178 = tpu.matmul %175, %177, %cst_100 {dimension_numbers = #tpu.dot_dimension_numbers<[1], [0], [0], [1], [0, 0, 1, 1], [], []>} : vector<64x128xf32>, vector<128x128xf32>, vector<64x128xf32> -> vector<64x128xf32>
    %179 = arith.addf %173, %178 : vector<64x128xf32>
    %180 = vector.extract_strided_slice %130 {offsets = [2, 2, 0], sizes = [8, 8, 128], strides = [1, 1, 1]} : vector<10x10x128xf32> to vector<8x8x128xf32>
    %181 = vector.shape_cast %180 : vector<8x8x128xf32> to vector<64x128xf32>
    %c8_101 = arith.constant 8 : index
    %c0_102 = arith.constant 0 : index
    %c0_103 = arith.constant 0 : index
    %182 = vector.load %arg3[%c8_101, %c0_102, %c0_103] : memref<9x128x128xf32, #tpu.memory_space<vmem>>, vector<1x128x128xf32>
    %183 = vector.shape_cast %182 : vector<1x128x128xf32> to vector<128x128xf32>
    %cst_104 = arith.constant dense<0.000000e+00> : vector<64x128xf32>
    %184 = tpu.matmul %181, %183, %cst_104 {dimension_numbers = #tpu.dot_dimension_numbers<[1], [0], [0], [1], [0, 0, 1, 1], [], []>} : vector<64x128xf32>, vector<128x128xf32>, vector<64x128xf32> -> vector<64x128xf32>
    %185 = arith.addf %179, %184 : vector<64x128xf32>
    %cst_105 = arith.constant dense<0.000000e+00> : vector<128xf32>
    %186 = vector.multi_reduction <add>, %185, %cst_105 [0] : vector<64x128xf32> to vector<128xf32>
    %187 = vector.shape_cast %186 : vector<128xf32> to vector<1x128xf32>
    %188 = arith.mulf %185, %185 : vector<64x128xf32>
    %cst_106 = arith.constant dense<0.000000e+00> : vector<128xf32>
    %189 = vector.multi_reduction <add>, %188, %cst_106 [0] : vector<64x128xf32> to vector<128xf32>
    %190 = vector.shape_cast %189 : vector<128xf32> to vector<1x128xf32>
    %191 = vector.extract_strided_slice %187 {offsets = [0, 0], sizes = [1, 16], strides = [1, 1]} : vector<1x128xf32> to vector<1x16xf32>
    %192 = vector.extract_strided_slice %187 {offsets = [0, 16], sizes = [1, 16], strides = [1, 1]} : vector<1x128xf32> to vector<1x16xf32>
    %193 = arith.addf %191, %192 : vector<1x16xf32>
    %194 = vector.extract_strided_slice %187 {offsets = [0, 32], sizes = [1, 16], strides = [1, 1]} : vector<1x128xf32> to vector<1x16xf32>
    %195 = arith.addf %193, %194 : vector<1x16xf32>
    %196 = vector.extract_strided_slice %187 {offsets = [0, 48], sizes = [1, 16], strides = [1, 1]} : vector<1x128xf32> to vector<1x16xf32>
    %197 = arith.addf %195, %196 : vector<1x16xf32>
    %198 = vector.extract_strided_slice %187 {offsets = [0, 64], sizes = [1, 16], strides = [1, 1]} : vector<1x128xf32> to vector<1x16xf32>
    %199 = arith.addf %197, %198 : vector<1x16xf32>
    %200 = vector.extract_strided_slice %187 {offsets = [0, 80], sizes = [1, 16], strides = [1, 1]} : vector<1x128xf32> to vector<1x16xf32>
    %201 = arith.addf %199, %200 : vector<1x16xf32>
    %202 = vector.extract_strided_slice %187 {offsets = [0, 96], sizes = [1, 16], strides = [1, 1]} : vector<1x128xf32> to vector<1x16xf32>
    %203 = arith.addf %201, %202 : vector<1x16xf32>
    %204 = vector.extract_strided_slice %187 {offsets = [0, 112], sizes = [1, 16], strides = [1, 1]} : vector<1x128xf32> to vector<1x16xf32>
    %205 = arith.addf %203, %204 : vector<1x16xf32>
    %cst_107 = arith.constant 0.001953125 : f32
    %206 = vector.broadcast %cst_107 : f32 to vector<1x16xf32>
    %207 = arith.mulf %205, %206 : vector<1x16xf32>
    %208 = vector.extract_strided_slice %190 {offsets = [0, 0], sizes = [1, 16], strides = [1, 1]} : vector<1x128xf32> to vector<1x16xf32>
    %209 = vector.extract_strided_slice %190 {offsets = [0, 16], sizes = [1, 16], strides = [1, 1]} : vector<1x128xf32> to vector<1x16xf32>
    %210 = arith.addf %208, %209 : vector<1x16xf32>
    %211 = vector.extract_strided_slice %190 {offsets = [0, 32], sizes = [1, 16], strides = [1, 1]} : vector<1x128xf32> to vector<1x16xf32>
    %212 = arith.addf %210, %211 : vector<1x16xf32>
    %213 = vector.extract_strided_slice %190 {offsets = [0, 48], sizes = [1, 16], strides = [1, 1]} : vector<1x128xf32> to vector<1x16xf32>
    %214 = arith.addf %212, %213 : vector<1x16xf32>
    %215 = vector.extract_strided_slice %190 {offsets = [0, 64], sizes = [1, 16], strides = [1, 1]} : vector<1x128xf32> to vector<1x16xf32>
    %216 = arith.addf %214, %215 : vector<1x16xf32>
    %217 = vector.extract_strided_slice %190 {offsets = [0, 80], sizes = [1, 16], strides = [1, 1]} : vector<1x128xf32> to vector<1x16xf32>
    %218 = arith.addf %216, %217 : vector<1x16xf32>
    %219 = vector.extract_strided_slice %190 {offsets = [0, 96], sizes = [1, 16], strides = [1, 1]} : vector<1x128xf32> to vector<1x16xf32>
    %220 = arith.addf %218, %219 : vector<1x16xf32>
    %221 = vector.extract_strided_slice %190 {offsets = [0, 112], sizes = [1, 16], strides = [1, 1]} : vector<1x128xf32> to vector<1x16xf32>
    %222 = arith.addf %220, %221 : vector<1x16xf32>
    %cst_108 = arith.constant 0.001953125 : f32
    %223 = vector.broadcast %cst_108 : f32 to vector<1x16xf32>
    %224 = arith.mulf %222, %223 : vector<1x16xf32>
    %225 = arith.mulf %207, %207 : vector<1x16xf32>
    %226 = arith.subf %224, %225 : vector<1x16xf32>
    %cst_109 = arith.constant 9.99999974E-6 : f32
    %227 = vector.broadcast %cst_109 : f32 to vector<1x16xf32>
    %228 = arith.addf %226, %227 : vector<1x16xf32>
    %229 = math.rsqrt %228 : vector<1x16xf32>
    %230 = tpu.concatenate %229, %229, %229, %229, %229, %229, %229, %229 in 1 : vector<1x16xf32>, vector<1x16xf32>, vector<1x16xf32>, vector<1x16xf32>, vector<1x16xf32>, vector<1x16xf32>, vector<1x16xf32>, vector<1x16xf32> -> vector<1x128xf32>
    %c0_110 = arith.constant 0 : index
    %c0_111 = arith.constant 0 : index
    %231 = vector.load %arg6[%c0_110, %c0_111] : memref<1x128xf32, #tpu.memory_space<vmem>>, vector<1x128xf32>
    %232 = arith.mulf %230, %231 : vector<1x128xf32>
    %c0_112 = arith.constant 0 : index
    %c0_113 = arith.constant 0 : index
    %233 = vector.load %arg7[%c0_112, %c0_113] : memref<1x128xf32, #tpu.memory_space<vmem>>, vector<1x128xf32>
    %234 = arith.mulf %207, %229 : vector<1x16xf32>
    %235 = tpu.concatenate %234, %234, %234, %234, %234, %234, %234, %234 in 1 : vector<1x16xf32>, vector<1x16xf32>, vector<1x16xf32>, vector<1x16xf32>, vector<1x16xf32>, vector<1x16xf32>, vector<1x16xf32>, vector<1x16xf32> -> vector<1x128xf32>
    %c0_114 = arith.constant 0 : index
    %c0_115 = arith.constant 0 : index
    %236 = vector.load %arg6[%c0_114, %c0_115] : memref<1x128xf32, #tpu.memory_space<vmem>>, vector<1x128xf32>
    %237 = arith.mulf %235, %236 : vector<1x128xf32>
    %238 = arith.subf %233, %237 : vector<1x128xf32>
    %239 = vector.broadcast %232 : vector<1x128xf32> to vector<64x128xf32>
    %240 = arith.mulf %185, %239 : vector<64x128xf32>
    %241 = vector.broadcast %238 : vector<1x128xf32> to vector<64x128xf32>
    %242 = arith.addf %240, %241 : vector<64x128xf32>
    %243 = vector.shape_cast %11 : vector<8x8x128xf32> to vector<64x128xf32>
    %244 = arith.addf %243, %242 : vector<64x128xf32>
    %245 = vector.shape_cast %244 : vector<64x128xf32> to vector<8x8x128xf32>
    %c0_116 = arith.constant 0 : index
    %c0_117 = arith.constant 0 : index
    %c0_118 = arith.constant 0 : index
    %c0_119 = arith.constant 0 : index
    %246 = vector.load %arg8[%c0_116, %c0_117, %c0_118, %c0_119] : memref<1x8x8x128xf32, #tpu.memory_space<vmem>>, vector<1x8x8x128xf32>
    %247 = vector.shape_cast %246 : vector<1x8x8x128xf32> to vector<8x8x128xf32>
    %248 = vector.shape_cast %245 : vector<8x8x128xf32> to vector<1x8x8x128xf32>
    tpu.vector_store %arg8[%c0_116, %c0_117, %c0_118, %c0_119], %248 {strides = array<i32>} : memref<1x8x8x128xf32, #tpu.memory_space<vmem>>, vector<1x8x8x128xf32>,
    return
  }
  func.func @transform_0(%arg0: i32) -> (i32, i32, i32, i32) {
    %c0_i32 = arith.constant 0 : i32
    %c0_i32_0 = arith.constant 0 : i32
    %c0_i32_1 = arith.constant 0 : i32
    %c0_i32_2 = arith.constant 0 : i32
    return %arg0, %c0_i32, %c0_i32_0, %c0_i32_1 : i32, i32, i32, i32
  }
  func.func @transform_1(%arg0: i32) -> (i32, i32, i32) {
    %c0_i32 = arith.constant 0 : i32
    %c0_i32_0 = arith.constant 0 : i32
    %c0_i32_1 = arith.constant 0 : i32
    %c0_i32_2 = arith.constant 0 : i32
    return %c0_i32, %c0_i32_0, %c0_i32_1 : i32, i32, i32
  }
  func.func @transform_2(%arg0: i32) -> (i32, i32, i32) {
    %c0_i32 = arith.constant 0 : i32
    %c0_i32_0 = arith.constant 0 : i32
    %c0_i32_1 = arith.constant 0 : i32
    %c0_i32_2 = arith.constant 0 : i32
    return %c0_i32, %c0_i32_0, %c0_i32_1 : i32, i32, i32
  }
  func.func @transform_3(%arg0: i32) -> (i32, i32) {
    %c0_i32 = arith.constant 0 : i32
    %c0_i32_0 = arith.constant 0 : i32
    %c0_i32_1 = arith.constant 0 : i32
    return %c0_i32, %c0_i32_0 : i32, i32
  }
  func.func @transform_4(%arg0: i32) -> (i32, i32) {
    %c0_i32 = arith.constant 0 : i32
    %c0_i32_0 = arith.constant 0 : i32
    %c0_i32_1 = arith.constant 0 : i32
    return %c0_i32, %c0_i32_0 : i32, i32
  }
  func.func @transform_5(%arg0: i32) -> (i32, i32) {
    %c0_i32 = arith.constant 0 : i32
    %c0_i32_0 = arith.constant 0 : i32
    %c0_i32_1 = arith.constant 0 : i32
    return %c0_i32, %c0_i32_0 : i32, i32
  }
  func.func @transform_6(%arg0: i32) -> (i32, i32) {
    %c0_i32 = arith.constant 0 : i32
    %c0_i32_0 = arith.constant 0 : i32
    %c0_i32_1 = arith.constant 0 : i32
    return %c0_i32, %c0_i32_0 : i32, i32
  }
  func.func @transform_7(%arg0: i32) -> (i32, i32, i32, i32) {
    %c0_i32 = arith.constant 0 : i32
    %c0_i32_0 = arith.constant 0 : i32
    %c0_i32_1 = arith.constant 0 : i32
    %c0_i32_2 = arith.constant 0 : i32
    return %arg0, %c0_i32, %c0_i32_0, %c0_i32_1 : i32, i32, i32, i32
  }
}

</mosaic_0001>

<llo_original>
// kernel: tpu_custom_call.1
$region0: #{tpu_custom_call.1}
  #allocation0 [shape = 'u32[]', space=smem, size = 0x4, offset = 0x4, fixed_abs, tag = 'smem constant byte address 0x4 - core index']
  #allocation1 [shape = 'u32[72,128]{1,0:T(1,128)}', space=vmem, size = 0x9000, scoped, tag = 'internal scratch']
  #allocation2 [shape = 'f32[10,10,128]{2,1,0:T(8,128)}', space=vmem, size = 0x14000, scoped, tag = 'scratch operand']
  %s0 = inlined_call_operand.hbm [shape: f32[2,8,8,128], index: 0, kind: input, shape index: {}]
  %s1 = inlined_call_operand.hbm [shape: f32[9,128,128], index: 1, kind: input, shape index: {}]
  %s2 = inlined_call_operand.hbm [shape: f32[9,128,128], index: 2, kind: input, shape index: {}]
  %s3 = inlined_call_operand.vmem [shape: f32[1,128], index: 3, kind: input, shape index: {}]
  %s4 = inlined_call_operand.vmem [shape: f32[1,128], index: 4, kind: input, shape index: {}]
  %s5 = inlined_call_operand.vmem [shape: f32[1,128], index: 5, kind: input, shape index: {}]
  %s6 = inlined_call_operand.vmem [shape: f32[1,128], index: 6, kind: input, shape index: {}]
  %s7 = inlined_call_operand.hbm [shape: f32[2,8,8,128], index: 7, kind: output, shape index: {}]
  %s8 = sld [smem:[#allocation0]]
  $region73: #{tpu_custom_call.1} parent=0
    _
  %s10 = ssub.s32 1, %s8
  %s11 = scalar_select 0, %s10, %s8
  $region1: #{tpu_custom_call.1} parent=0
    #allocation3 [shape = 'u8[65536]{0}', space=vmem, size = 0x10000, scoped, tag = 'input window, operand 0']
    #allocation4 [shape = 's32[2]{0}', space=sflag, size = 0x8, scoped, tag = 'scoped memory for tpu_custom_call.1']
    #allocation5 [shape = 's32[2]{0}', space=sflag, size = 0x8, scoped, tag = 'scoped memory for tpu_custom_call.1']
    #allocation6 [shape = 'u8[589824]{0}', space=vmem, size = 0x90000, scoped, tag = 'input window, operand 1, single buffered']
    #allocation7 [shape = 's32[1]{0}', space=sflag, size = 0x4, scoped, tag = 'scoped memory for tpu_custom_call.1']
    #allocation8 [shape = 'u8[589824]{0}', space=vmem, size = 0x90000, scoped, tag = 'input window, operand 2, single buffered']
    #allocation9 [shape = 'u8[65536]{0}', space=vmem, size = 0x10000, scoped, tag = 'output window, operand 0']
    %12 = vsyncpa [#allocation4], 0
    %s13 = scalar_lea.sflag [#allocation4], 1
    %14 = vsyncpa %s13, 0
    %15 = vsyncpa [#allocation7], 0
    %16 = vsyncpa [#allocation5], 0
    %s17 = scalar_lea.sflag [#allocation5], 1
    %18 = vsyncpa %s17, 0
    loop: start=0, step=1, limit=4
    $region2: #{tpu_custom_call.1} parent=1 // loop_pre_header
      _
    $region3: #{tpu_custom_call.1} parent=1 // loop_header
      %s20 = sphi 0, %s24
      %p21 = scmp.ge.s32.totalorder %s20, 4
      %s30 = sphi 0, %s32
      %s33 = sphi 0, %s30
      %s34 = sphi 0, %s33
      %s50 = sphi 0, %s34
      %s54 = sphi 0, %s54
      %s56 = sphi 0, %s54
      %s57 = sphi 0, %s56
      %s71 = sphi 0, %s57
      %s75 = sphi 0, %s75
      %s77 = sphi 0, %s75
      %s78 = sphi 0, %s77
      %s92 = sphi 0, %s78
      %s96 = sphi 0, %s96
      %s98 = sphi 0, %s96
      %s99 = sphi 0, %s98
      %s113 = sphi 0, %s99
      %s117 = sphi 0, %s117
      %s119 = sphi 0, %s117
      %s120 = sphi 0, %s119
      %s134 = sphi 0, %s120
      %s138 = sphi 0, %s138
      %s140 = sphi 0, %s138
      %s141 = sphi 0, %s140
      %s155 = sphi 0, %s141
      %s159 = sphi 0, %s159
      %s161 = sphi 0, %s159
      %s162 = sphi 0, %s161
      %s176 = sphi 0, %s162
      %s182 = sphi 0, %s184
      %s185 = sphi 0, %s182
      %s186 = sphi 0, %s185
      %s202 = sphi 0, %s186
    $region4: #{tpu_custom_call.1} parent=1 // loop_header_branch
      %23 = sbr.rel (%p21) target = $region8
    $region5: #{tpu_custom_call.1} parent=1 // loop_body
      %s25 = ssub.s32 %s20, 1
      %s26 = ssub.s32 %s20, 2
      %s27 = sadd.s32 %s20, 1
      %s28 = ssub.s32 %s20, %s27
      %p29 = scmp.eq.s32.totalorder %s28, 0
      %s31 = sadd.s32 %s30, 1
      %s32 = scalar_select %p29, %s30, %s31
      %p35 = pneg %p29
      %p36 = scmp.eq.s32.totalorder %s20, 1
      %p37 = por %p35, %p36
      %p38 = scmp.ne.s32.totalorder %s30, %s33
      %p39 = scmp.eq.s32.totalorder %s20, 0
      %p40 = por %p38, %p39
      %p41 = scmp.ne.s32.totalorder %s30, %s33
      %p42 = scmp.eq.s32.totalorder %s25, 1
      %p43 = por %p41, %p42
      %p44 = scmp.ne.s32.totalorder %s33, %s34
      %p45 = scmp.eq.s32.totalorder %s25, 0
      %p46 = por %p44, %p45
      %p47 = scmp.ne.s32.totalorder %s33, %s34
      %p48 = scmp.eq.s32.totalorder %s26, 1
      %p49 = por %p47, %p48
      %p51 = scmp.ne.s32.totalorder %s34, %s50
      %p52 = scmp.eq.s32.totalorder %s26, 0
      %p53 = por %p51, %p52
      %s55 = sadd.s32 %s54, 1
      %p58 = scmp.eq.s32.totalorder %s20, 1
      %p59 = scmp.ne.s32.totalorder %s54, %s56
      %p60 = scmp.eq.s32.totalorder %s20, 0
      %p61 = por %p59, %p60
      %p62 = scmp.ne.s32.totalorder %s54, %s56
      %p63 = scmp.eq.s32.totalorder %s25, 1
      %p64 = por %p62, %p63
      %p65 = scmp.ne.s32.totalorder %s56, %s57
      %p66 = scmp.eq.s32.totalorder %s25, 0
      %p67 = por %p65, %p66
      %p68 = scmp.ne.s32.totalorder %s56, %s57
      %p69 = scmp.eq.s32.totalorder %s26, 1
      %p70 = por %p68, %p69
      %p72 = scmp.ne.s32.totalorder %s57, %s71
      %p73 = scmp.eq.s32.totalorder %s26, 0
      %p74 = por %p72, %p73
      %s76 = sadd.s32 %s75, 1
      %p79 = scmp.eq.s32.totalorder %s20, 1
      %p80 = scmp.ne.s32.totalorder %s75, %s77
      %p81 = scmp.eq.s32.totalorder %s20, 0
      %p82 = por %p80, %p81
      %p83 = scmp.ne.s32.totalorder %s75, %s77
      %p84 = scmp.eq.s32.totalorder %s25, 1
      %p85 = por %p83, %p84
      %p86 = scmp.ne.s32.totalorder %s77, %s78
      %p87 = scmp.eq.s32.totalorder %s25, 0
      %p88 = por %p86, %p87
      %p89 = scmp.ne.s32.totalorder %s77, %s78
      %p90 = scmp.eq.s32.totalorder %s26, 1
      %p91 = por %p89, %p90
      %p93 = scmp.ne.s32.totalorder %s78, %s92
      %p94 = scmp.eq.s32.totalorder %s26, 0
      %p95 = por %p93, %p94
      %s97 = sadd.s32 %s96, 1
      %p100 = scmp.eq.s32.totalorder %s20, 1
      %p101 = scmp.ne.s32.totalorder %s96, %s98
      %p102 = scmp.eq.s32.totalorder %s20, 0
      %p103 = por %p101, %p102
      %p104 = scmp.ne.s32.totalorder %s96, %s98
      %p105 = scmp.eq.s32.totalorder %s25, 1
      %p106 = por %p104, %p105
      %p107 = scmp.ne.s32.totalorder %s98, %s99
      %p108 = scmp.eq.s32.totalorder %s25, 0
      %p109 = por %p107, %p108
      %p110 = scmp.ne.s32.totalorder %s98, %s99
      %p111 = scmp.eq.s32.totalorder %s26, 1
      %p112 = por %p110, %p111
      %p114 = scmp.ne.s32.totalorder %s99, %s113
      %p115 = scmp.eq.s32.totalorder %s26, 0
      %p116 = por %p114, %p115
      %s118 = sadd.s32 %s117, 1
      %p121 = scmp.eq.s32.totalorder %s20, 1
      %p122 = scmp.ne.s32.totalorder %s117, %s119
      %p123 = scmp.eq.s32.totalorder %s20, 0
      %p124 = por %p122, %p123
      %p125 = scmp.ne.s32.totalorder %s117, %s119
      %p126 = scmp.eq.s32.totalorder %s25, 1
      %p127 = por %p125, %p126
      %p128 = scmp.ne.s32.totalorder %s119, %s120
      %p129 = scmp.eq.s32.totalorder %s25, 0
      %p130 = por %p128, %p129
      %p131 = scmp.ne.s32.totalorder %s119, %s120
      %p132 = scmp.eq.s32.totalorder %s26, 1
      %p133 = por %p131, %p132
      %p135 = scmp.ne.s32.totalorder %s120, %s134
      %p136 = scmp.eq.s32.totalorder %s26, 0
      %p137 = por %p135, %p136
      %s139 = sadd.s32 %s138, 1
      %p142 = scmp.eq.s32.totalorder %s20, 1
      %p143 = scmp.ne.s32.totalorder %s138, %s140
      %p144 = scmp.eq.s32.totalorder %s20, 0
      %p145 = por %p143, %p144
      %p146 = scmp.ne.s32.totalorder %s138, %s140
      %p147 = scmp.eq.s32.totalorder %s25, 1
      %p148 = por %p146, %p147
      %p149 = scmp.ne.s32.totalorder %s140, %s141
      %p150 = scmp.eq.s32.totalorder %s25, 0
      %p151 = por %p149, %p150
      %p152 = scmp.ne.s32.totalorder %s140, %s141
      %p153 = scmp.eq.s32.totalorder %s26, 1
      %p154 = por %p152, %p153
      %p156 = scmp.ne.s32.totalorder %s141, %s155
      %p157 = scmp.eq.s32.totalorder %s26, 0
      %p158 = por %p156, %p157
      %s160 = sadd.s32 %s159, 1
      %p163 = scmp.eq.s32.totalorder %s20, 1
      %p164 = scmp.ne.s32.totalorder %s159, %s161
      %p165 = scmp.eq.s32.totalorder %s20, 0
      %p166 = por %p164, %p165
      %p167 = scmp.ne.s32.totalorder %s159, %s161
      %p168 = scmp.eq.s32.totalorder %s25, 1
      %p169 = por %p167, %p168
      %p170 = scmp.ne.s32.totalorder %s161, %s162
      %p171 = scmp.eq.s32.totalorder %s25, 0
      %p172 = por %p170, %p171
      %p173 = scmp.ne.s32.totalorder %s161, %s162
      %p174 = scmp.eq.s32.totalorder %s26, 1
      %p175 = por %p173, %p174
      %p177 = scmp.ne.s32.totalorder %s162, %s176
      %p178 = scmp.eq.s32.totalorder %s26, 0
      %p179 = por %p177, %p178
      %s180 = ssub.s32 %s20, %s27
      %p181 = scmp.eq.s32.totalorder %s180, 0
      %s183 = sadd.s32 %s182, 1
      %s184 = scalar_select %p181, %s182, %s183
      %p187 = pneg %p181
      %p188 = scmp.eq.s32.totalorder %s20, 1
      %p189 = por %p187, %p188
      %p190 = scmp.ne.s32.totalorder %s182, %s185
      %p191 = scmp.eq.s32.totalorder %s20, 0
      %p192 = por %p190, %p191
      %p193 = scmp.ne.s32.totalorder %s182, %s185
      %p194 = scmp.eq.s32.totalorder %s25, 1
      %p195 = por %p193, %p194
      %p196 = scmp.ne.s32.totalorder %s185, %s186
      %p197 = scmp.eq.s32.totalorder %s25, 0
      %p198 = por %p196, %p197
      %p199 = scmp.ne.s32.totalorder %s185, %s186
      %p200 = scmp.eq.s32.totalorder %s26, 1
      %p201 = por %p199, %p200
      %p203 = scmp.ne.s32.totalorder %s186, %s202
      %p204 = scmp.eq.s32.totalorder %s26, 0
      %p205 = por %p203, %p204
      %p206 = scmp.le.s32.totalorder 1, %s20
      %p207 = scmp.lt.s32.totalorder %s20, 3
      %p208 = pnand %p206, %p207
      %p209 = pneg %p208
      // Predicated region
      $region9: #{tpu_custom_call.1} parent=5 // pred_check
        _
      $region10: #{tpu_custom_call.1} parent=5 // pred_check_branch
        %211 = sbr.rel (%p208) target = $region12
      $region11: #{tpu_custom_call.1} parent=5 // pred_region
        %s212 = ssub.s32 %s20, 1
        // Predicated region
        $region13: #{tpu_custom_call.1} parent=11 // pred_check
          %p213 = pneg %p67
        $region14: #{tpu_custom_call.1} parent=11 // pred_check_branch
          %215 = sbr.rel (%p213) target = $region16
        $region15: #{tpu_custom_call.1} parent=11 // pred_region
          %217 = vsyncadd [#allocation7], 0
          %s218 = sshll.u32 %s1, 4
          %s219 = int_to_ptr.hbm [resolvable:$true] %s218
          %s220 = sshll.u32 [#allocation6], 4
          %s221 = int_to_ptr.vmem [resolvable:$true] %s220
          %226 = dma.hbm_to_vmem [thread:$0]  %s219, 18432, %s221, [#allocation7], 128, 128, 8
        $region16: #{tpu_custom_call.1} parent=11 // pred_fallthru
          _
        // Predicated region
        $region17: #{tpu_custom_call.1} parent=11 // pred_check
          %p227 = pneg %p88
        $region18: #{tpu_custom_call.1} parent=11 // pred_check_branch
          %229 = sbr.rel (%p227) target = $region20
        $region19: #{tpu_custom_call.1} parent=11 // pred_region
          %231 = vsyncadd [#allocation7], 0
          %s232 = sshll.u32 %s2, 4
          %s233 = int_to_ptr.hbm [resolvable:$true] %s232
          %s234 = sshll.u32 [#allocation8], 4
          %s235 = int_to_ptr.vmem [resolvable:$true] %s234
          %240 = dma.hbm_to_vmem [thread:$0]  %s233, 18432, %s235, [#allocation7], 128, 128, 8
        $region20: #{tpu_custom_call.1} parent=11 // pred_fallthru
          _
        // Predicated region
        $region21: #{tpu_custom_call.1} parent=11 // pred_check
          %p241 = pneg %p109
        $region22: #{tpu_custom_call.1} parent=11 // pred_check_branch
          %243 = sbr.rel (%p241) target = $region24
        $region23: #{tpu_custom_call.1} parent=11 // pred_region
          _
        $region24: #{tpu_custom_call.1} parent=11 // pred_fallthru
          _
        // Predicated region
        $region25: #{tpu_custom_call.1} parent=11 // pred_check
          %p244 = pneg %p130
        $region26: #{tpu_custom_call.1} parent=11 // pred_check_branch
          %246 = sbr.rel (%p244) target = $region28
        $region27: #{tpu_custom_call.1} parent=11 // pred_region
          _
        $region28: #{tpu_custom_call.1} parent=11 // pred_fallthru
          _
        // Predicated region
        $region29: #{tpu_custom_call.1} parent=11 // pred_check
          %p247 = pneg %p151
        $region30: #{tpu_custom_call.1} parent=11 // pred_check_branch
          %249 = sbr.rel (%p247) target = $region32
        $region31: #{tpu_custom_call.1} parent=11 // pred_region
          _
        $region32: #{tpu_custom_call.1} parent=11 // pred_fallthru
          _
        // Predicated region
        $region33: #{tpu_custom_call.1} parent=11 // pred_check
          %p250 = pneg %p172
        $region34: #{tpu_custom_call.1} parent=11 // pred_check_branch
          %252 = sbr.rel (%p250) target = $region36
        $region35: #{tpu_custom_call.1} parent=11 // pred_region
          _
        $region36: #{tpu_custom_call.1} parent=11 // pred_fallthru
          _
      $region12: #{tpu_custom_call.1} parent=5 // pred_fallthru
        _
      %p253 = scmp.lt.s32.totalorder %s20, 2
      // Predicated region
      $region37: #{tpu_custom_call.1} parent=5 // pred_check
        %p254 = pneg %p253
      $region38: #{tpu_custom_call.1} parent=5 // pred_check_branch
        %256 = sbr.rel (%p254) target = $region40
      $region39: #{tpu_custom_call.1} parent=5 // pred_region
        // Predicated region
        $region41: #{tpu_custom_call.1} parent=39 // pred_check
          %p257 = pneg %p40
        $region42: #{tpu_custom_call.1} parent=39 // pred_check_branch
          %259 = sbr.rel (%p257) target = $region44
        $region43: #{tpu_custom_call.1} parent=39 // pred_region
          %s260 = sand.u32 %s30, 1
          %s261 = scalar_lea.sflag [#allocation4], %s260
          %s262 = sand.u32 %s30, 1
          %s263 = smul.addr %s262, 64
          %s264 = scalar_lea.vmem [#allocation3], %s263
          %266 = vsyncadd %s261, 0
          %s267 = smul.addr %s20, 8
          %s268 = smul.addr %s267, 8
          %s269 = scalar_lea.hbm %s0, %s268
          %s270 = sshll.u32 %s269, 4
          %s271 = int_to_ptr.hbm [resolvable:$true] %s270
          %s272 = sshll.u32 %s264, 4
          %s273 = int_to_ptr.vmem [resolvable:$true] %s272
          %278 = dma.hbm_to_vmem [thread:$0]  %s271, 1024, %s273, %s261, 128, 128, 8
        $region44: #{tpu_custom_call.1} parent=39 // pred_fallthru
          _
      $region40: #{tpu_custom_call.1} parent=5 // pred_fallthru
        _
      %p279 = scmp.le.s32.totalorder 1, %s20
      %p280 = scmp.lt.s32.totalorder %s20, 3
      %p281 = pnand %p279, %p280
      %p282 = pneg %p281
      // Predicated region
      $region45: #{tpu_custom_call.1} parent=5 // pred_check
        _
      $region46: #{tpu_custom_call.1} parent=5 // pred_check_branch
        %284 = sbr.rel (%p281) target = $region48
      $region47: #{tpu_custom_call.1} parent=5 // pred_region
        %s285 = ssub.s32 %s20, 1
        %s286 = sand.u32 %s33, 1
        %s287 = scalar_lea.sflag [#allocation4], %s286
        %s288 = sand.u32 %s33, 1
        %s289 = smul.addr %s288, 64
        %s290 = scalar_lea.vmem [#allocation3], %s289
        // Predicated region
        $region49: #{tpu_custom_call.1} parent=47 // pred_check
          %p291 = pneg %p46
        $region50: #{tpu_custom_call.1} parent=47 // pred_check_branch
          %293 = sbr.rel (%p291) target = $region52
        $region51: #{tpu_custom_call.1} parent=47 // pred_region
          %295 = dma.done %s287, 1024
        $region52: #{tpu_custom_call.1} parent=47 // pred_fallthru
          _
        // Predicated region
        $region53: #{tpu_custom_call.1} parent=47 // pred_check
          %p296 = pneg %p67
        $region54: #{tpu_custom_call.1} parent=47 // pred_check_branch
          %298 = sbr.rel (%p296) target = $region56
        $region55: #{tpu_custom_call.1} parent=47 // pred_region
          %300 = dma.done [#allocation7], 18432
        $region56: #{tpu_custom_call.1} parent=47 // pred_fallthru
          _
        // Predicated region
        $region57: #{tpu_custom_call.1} parent=47 // pred_check
          %p301 = pneg %p88
        $region58: #{tpu_custom_call.1} parent=47 // pred_check_branch
          %303 = sbr.rel (%p301) target = $region60
        $region59: #{tpu_custom_call.1} parent=47 // pred_region
          %305 = dma.done [#allocation7], 18432
        $region60: #{tpu_custom_call.1} parent=47 // pred_fallthru
          _
        %s306 = sand.u32 %s33, 1
        %s307 = scalar_lea.sflag [#allocation4], %s306
        %s308 = sand.u32 %s33, 1
        %s309 = smul.addr %s308, 64
        %s310 = scalar_lea.vmem [#allocation3], %s309
        %p311 = pneg %p46
        %p312 = pneg %p43
        %p313 = pneg %p67
        %p314 = pneg %p64
        %p315 = pneg %p88
        %p316 = pneg %p85
        %p317 = pneg %p109
        %p318 = pneg %p106
        %p319 = pneg %p130
        %p320 = pneg %p127
        %p321 = pneg %p151
        %p322 = pneg %p148
        %p323 = pneg %p172
        %p324 = pneg %p169
        %p325 = pneg %p198
        %p326 = pneg %p195
        %s327 = sand.u32 %s185, 1
        %s328 = scalar_lea.sflag [#allocation5], %s327
        %s329 = sand.u32 %s185, 1
        %s330 = smul.addr %s329, 64
        %s331 = scalar_lea.vmem [#allocation9], %s330
        %332 = vst [vmem:[#allocation2] sm:$0xff] 0.0
        %333 = vst [vmem:[#allocation2 + $0x8] sm:$0x3] 0.0
        %s334 = scalar_lea.vmem [#allocation2], 144
        %335 = vst [vmem:[%s334] sm:$0xff] 0.0
        %336 = vst [vmem:[%s334 + $0x8] sm:$0x3] 0.0
        %s337 = scalar_lea.vmem [#allocation2], 16
        %338 = vst [vmem:[%s337] sm:$0x1] 0.0
        %339 = vst [vmem:[%s337 + $0x10] sm:$0x1] 0.0
        %340 = vst [vmem:[%s337 + $0x20] sm:$0x1] 0.0
        %341 = vst [vmem:[%s337 + $0x30] sm:$0x1] 0.0
        %342 = vst [vmem:[%s337 + $0x40] sm:$0x1] 0.0
        %343 = vst [vmem:[%s337 + $0x50] sm:$0x1] 0.0
        %344 = vst [vmem:[%s337 + $0x60] sm:$0x1] 0.0
        %345 = vst [vmem:[%s337 + $0x70] sm:$0x1] 0.0
        %346 = vst [vmem:[%s337 + $0x9] sm:$0x1] 0.0
        %347 = vst [vmem:[%s337 + $0x19] sm:$0x1] 0.0
        %348 = vst [vmem:[%s337 + $0x29] sm:$0x1] 0.0
        %349 = vst [vmem:[%s337 + $0x39] sm:$0x1] 0.0
        %350 = vst [vmem:[%s337 + $0x49] sm:$0x1] 0.0
        %351 = vst [vmem:[%s337 + $0x59] sm:$0x1] 0.0
        %352 = vst [vmem:[%s337 + $0x69] sm:$0x1] 0.0
        %353 = vst [vmem:[%s337 + $0x79] sm:$0x1] 0.0
        %v354 = vld [vmem:[%s290] sm:$0xff]
        %v355 = vld [vmem:[%s290 + $0x8] sm:$0xff]
        %v356 = vld [vmem:[%s290 + $0x10] sm:$0xff]
        %v357 = vld [vmem:[%s290 + $0x18] sm:$0xff]
        %v358 = vld [vmem:[%s290 + $0x20] sm:$0xff]
        %v359 = vld [vmem:[%s290 + $0x28] sm:$0xff]
        %v360 = vld [vmem:[%s290 + $0x30] sm:$0xff]
        %v361 = vld [vmem:[%s290 + $0x38] sm:$0xff]
        %362 = vst [vmem:[%s337 + $0x1] sm:$0xff] %v354
        %363 = vst [vmem:[%s337 + $0x11] sm:$0xff] %v355
        %364 = vst [vmem:[%s337 + $0x21] sm:$0xff] %v356
        %365 = vst [vmem:[%s337 + $0x31] sm:$0xff] %v357
        %366 = vst [vmem:[%s337 + $0x41] sm:$0xff] %v358
        %367 = vst [vmem:[%s337 + $0x51] sm:$0xff] %v359
        %368 = vst [vmem:[%s337 + $0x61] sm:$0xff] %v360
        %369 = vst [vmem:[%s337 + $0x71] sm:$0xff] %v361
        %v370 = vld [vmem:[#allocation2] sm:$0xff]
        %v371 = vld [vmem:[#allocation2 + $0x8] sm:$0x3]
        %v372 = vld [vmem:[#allocation2 + $0x10] sm:$0xff]
        %v373 = vld [vmem:[#allocation2 + $0x18] sm:$0x3]
        %v374 = vld [vmem:[#allocation2 + $0x20] sm:$0xff]
        %v375 = vld [vmem:[#allocation2 + $0x28] sm:$0x3]
        %v376 = vld [vmem:[#allocation2 + $0x30] sm:$0xff]
        %v377 = vld [vmem:[#allocation2 + $0x38] sm:$0x3]
        %v378 = vld [vmem:[#allocation2 + $0x40] sm:$0xff]
        %v379 = vld [vmem:[#allocation2 + $0x48] sm:$0x3]
        %v380 = vld [vmem:[#allocation2 + $0x50] sm:$0xff]
        %v381 = vld [vmem:[#allocation2 + $0x58] sm:$0x3]
        %v382 = vld [vmem:[#allocation2 + $0x60] sm:$0xff]
        %v383 = vld [vmem:[#allocation2 + $0x68] sm:$0x3]
        %v384 = vld [vmem:[#allocation2 + $0x70] sm:$0xff]
        %v385 = vld [vmem:[#allocation2 + $0x78] sm:$0x3]
        %v386 = vld [vmem:[#allocation2 + $0x80] sm:$0xff]
        %v387 = vld [vmem:[#allocation2 + $0x88] sm:$0x3]
        %v388 = vld [vmem:[#allocation2 + $0x90] sm:$0xff]
        %v389 = vld [vmem:[#allocation2 + $0x98] sm:$0x3]
        %v390 = vld [vmem:[#allocation6] sm:$0xff]
        %v391 = vld [vmem:[#allocation6 + $0x8] sm:$0xff]
        %v392 = vld [vmem:[#allocation6 + $0x10] sm:$0xff]
        %v393 = vld [vmem:[#allocation6 + $0x18] sm:$0xff]
        %v394 = vld [vmem:[#allocation6 + $0x20] sm:$0xff]
        %v395 = vld [vmem:[#allocation6 + $0x28] sm:$0xff]
        %v396 = vld [vmem:[#allocation6 + $0x30] sm:$0xff]
        %v397 = vld [vmem:[#allocation6 + $0x38] sm:$0xff]
        %v398 = vld [vmem:[#allocation6 + $0x40] sm:$0xff]
        %v399 = vld [vmem:[#allocation6 + $0x48] sm:$0xff]
        %v400 = vld [vmem:[#allocation6 + $0x50] sm:$0xff]
        %v401 = vld [vmem:[#allocation6 + $0x58] sm:$0xff]
        %v402 = vld [vmem:[#allocation6 + $0x60] sm:$0xff]
        %v403 = vld [vmem:[#allocation6 + $0x68] sm:$0xff]
        %v404 = vld [vmem:[#allocation6 + $0x70] sm:$0xff]
        %v405 = vld [vmem:[#allocation6 + $0x78] sm:$0xff]
        %vm422 = vcmask 1046528
        %v423 = vrot.slane %v370, 1
        %v424 = vrot.slane %v371, 1
        %v425 = vsel %vm422, %v423, %v424
        %v426 = vrot.slane %v372, 1
        %v427 = vrot.slane %v373, 1
        %v428 = vsel %vm422, %v426, %v427
        %v429 = vrot.slane %v374, 1
        %v430 = vrot.slane %v375, 1
        %v431 = vsel %vm422, %v429, %v430
        %v432 = vrot.slane %v376, 1
        %v433 = vrot.slane %v377, 1
        %v434 = vsel %vm422, %v432, %v433
        %v435 = vrot.slane %v378, 1
        %v436 = vrot.slane %v379, 1
        %v437 = vsel %vm422, %v435, %v436
        %v438 = vrot.slane %v380, 1
        %v439 = vrot.slane %v381, 1
        %v440 = vsel %vm422, %v438, %v439
        %v441 = vrot.slane %v382, 1
        %v442 = vrot.slane %v383, 1
        %v443 = vsel %vm422, %v441, %v442
        %v444 = vrot.slane %v384, 1
        %v445 = vrot.slane %v385, 1
        %v446 = vsel %vm422, %v444, %v445
        %s455 = scalar_lea.vmem [#allocation6], 128
        %v456 = vld [vmem:[%s455] sm:$0xff]
        %v457 = vld [vmem:[%s455 + $0x8] sm:$0xff]
        %v458 = vld [vmem:[%s455 + $0x10] sm:$0xff]
        %v459 = vld [vmem:[%s455 + $0x18] sm:$0xff]
        %v460 = vld [vmem:[%s455 + $0x20] sm:$0xff]
        %v461 = vld [vmem:[%s455 + $0x28] sm:$0xff]
        %v462 = vld [vmem:[%s455 + $0x30] sm:$0xff]
        %v463 = vld [vmem:[%s455 + $0x38] sm:$0xff]
        %v464 = vld [vmem:[%s455 + $0x40] sm:$0xff]
        %v465 = vld [vmem:[%s455 + $0x48] sm:$0xff]
        %v466 = vld [vmem:[%s455 + $0x50] sm:$0xff]
        %v467 = vld [vmem:[%s455 + $0x58] sm:$0xff]
        %v468 = vld [vmem:[%s455 + $0x60] sm:$0xff]
        %v469 = vld [vmem:[%s455 + $0x68] sm:$0xff]
        %v470 = vld [vmem:[%s455 + $0x70] sm:$0xff]
        %v471 = vld [vmem:[%s455 + $0x78] sm:$0xff]
        %472 = vmatpush.msra.mxu0 %v471
        %473 = vmatpush.msra.mxu0 %v470
        %474 = vmatpush.msra.mxu0 %v469
        %475 = vmatpush.msra.mxu0 %v468
        %476 = vmatpush.msra.mxu0 %v467
        %477 = vmatpush.msra.mxu0 %v466
        %478 = vmatpush.msra.mxu0 %v465
        %479 = vmatpush.msra.mxu0 %v464
        %480 = vmatpush.msra.mxu0 %v463
        %481 = vmatpush.msra.mxu0 %v462
        %482 = vmatpush.msra.mxu0 %v461
        %483 = vmatpush.msra.mxu0 %v460
        %484 = vmatpush.msra.mxu0 %v459
        %485 = vmatpush.msra.mxu0 %v458
        %486 = vmatpush.msra.mxu0 %v457
        %487 = vmatpush.msra.mxu0 %v456
        %488 = vmatmul.f32.gmra.mxu0 %v425
        %v489 = vpop.f32.mrf.mxu0
        %v490 = vadd.f32 0.0, %v489
        %491 = vmatmul.f32.gmra.mxu0 %v428
        %v492 = vpop.f32.mrf.mxu0
        %v493 = vadd.f32 0.0, %v492
        %494 = vmatmul.f32.gmra.mxu0 %v431
        %v495 = vpop.f32.mrf.mxu0
        %v496 = vadd.f32 0.0, %v495
        %497 = vmatmul.f32.gmra.mxu0 %v434
        %v498 = vpop.f32.mrf.mxu0
        %v499 = vadd.f32 0.0, %v498
        %500 = vmatmul.f32.gmra.mxu0 %v437
        %v501 = vpop.f32.mrf.mxu0
        %v502 = vadd.f32 0.0, %v501
        %503 = vmatmul.f32.gmra.mxu0 %v440
        %v504 = vpop.f32.mrf.mxu0
        %v505 = vadd.f32 0.0, %v504
        %506 = vmatmul.f32.gmra.mxu0 %v443
        %v507 = vpop.f32.mrf.mxu0
        %v508 = vadd.f32 0.0, %v507
        %509 = vmatmul.f32.gmra.mxu0 %v446
        %v510 = vpop.f32.mrf.mxu0
        %v511 = vadd.f32 0.0, %v510
        %512 = vdwg.mxu0
        %513 = vmatpush.msra.mxu0 %v405
        %514 = vmatpush.msra.mxu0 %v404
        %515 = vmatpush.msra.mxu0 %v403
        %516 = vmatpush.msra.mxu0 %v402
        %517 = vmatpush.msra.mxu0 %v401
        %518 = vmatpush.msra.mxu0 %v400
        %519 = vmatpush.msra.mxu0 %v399
        %520 = vmatpush.msra.mxu0 %v398
        %521 = vmatpush.msra.mxu0 %v397
        %522 = vmatpush.msra.mxu0 %v396
        %523 = vmatpush.msra.mxu0 %v395
        %524 = vmatpush.msra.mxu0 %v394
        %525 = vmatpush.msra.mxu0 %v393
        %526 = vmatpush.msra.mxu0 %v392
        %527 = vmatpush.msra.mxu0 %v391
        %528 = vmatpush.msra.mxu0 %v390
        %529 = vmatmul.f32.gmra.mxu0 %v370
        %v530 = vpop.f32.mrf.mxu0
        %v531 = vadd.f32 %v490, %v530
        %532 = vmatmul.f32.gmra.mxu0 %v372
        %v533 = vpop.f32.mrf.mxu0
        %v534 = vadd.f32 %v493, %v533
        %535 = vmatmul.f32.gmra.mxu0 %v374
        %v536 = vpop.f32.mrf.mxu0
        %v537 = vadd.f32 %v496, %v536
        %538 = vmatmul.f32.gmra.mxu0 %v376
        %v539 = vpop.f32.mrf.mxu0
        %v540 = vadd.f32 %v499, %v539
        %541 = vmatmul.f32.gmra.mxu0 %v378
        %v542 = vpop.f32.mrf.mxu0
        %v543 = vadd.f32 %v502, %v542
        %544 = vmatmul.f32.gmra.mxu0 %v380
        %v545 = vpop.f32.mrf.mxu0
        %v546 = vadd.f32 %v505, %v545
        %547 = vmatmul.f32.gmra.mxu0 %v382
        %v548 = vpop.f32.mrf.mxu0
        %v549 = vadd.f32 %v508, %v548
        %550 = vmatmul.f32.gmra.mxu0 %v384
        %v551 = vpop.f32.mrf.mxu0
        %v552 = vadd.f32 %v511, %v551
        %553 = vdwg.mxu0
        %vm554 = vcmask 1045504
        %v555 = vrot.slane %v370, 2
        %v556 = vrot.slane %v371, 2
        %v557 = vsel %vm554, %v555, %v556
        %v558 = vrot.slane %v372, 2
        %v559 = vrot.slane %v373, 2
        %v560 = vsel %vm554, %v558, %v559
        %v561 = vrot.slane %v374, 2
        %v562 = vrot.slane %v375, 2
        %v563 = vsel %vm554, %v561, %v562
        %v564 = vrot.slane %v376, 2
        %v565 = vrot.slane %v377, 2
        %v566 = vsel %vm554, %v564, %v565
        %v567 = vrot.slane %v378, 2
        %v568 = vrot.slane %v379, 2
        %v569 = vsel %vm554, %v567, %v568
        %v570 = vrot.slane %v380, 2
        %v571 = vrot.slane %v381, 2
        %v572 = vsel %vm554, %v570, %v571
        %v573 = vrot.slane %v382, 2
        %v574 = vrot.slane %v383, 2
        %v575 = vsel %vm554, %v573, %v574
        %v576 = vrot.slane %v384, 2
        %v577 = vrot.slane %v385, 2
        %v578 = vsel %vm554, %v576, %v577
        %s587 = scalar_lea.vmem [#allocation6], 256
        %v588 = vld [vmem:[%s587] sm:$0xff]
        %v589 = vld [vmem:[%s587 + $0x8] sm:$0xff]
        %v590 = vld [vmem:[%s587 + $0x10] sm:$0xff]
        %v591 = vld [vmem:[%s587 + $0x18] sm:$0xff]
        %v592 = vld [vmem:[%s587 + $0x20] sm:$0xff]
        %v593 = vld [vmem:[%s587 + $0x28] sm:$0xff]
        %v594 = vld [vmem:[%s587 + $0x30] sm:$0xff]
        %v595 = vld [vmem:[%s587 + $0x38] sm:$0xff]
        %v596 = vld [vmem:[%s587 + $0x40] sm:$0xff]
        %v597 = vld [vmem:[%s587 + $0x48] sm:$0xff]
        %v598 = vld [vmem:[%s587 + $0x50] sm:$0xff]
        %v599 = vld [vmem:[%s587 + $0x58] sm:$0xff]
        %v600 = vld [vmem:[%s587 + $0x60] sm:$0xff]
        %v601 = vld [vmem:[%s587 + $0x68] sm:$0xff]
        %v602 = vld [vmem:[%s587 + $0x70] sm:$0xff]
        %v603 = vld [vmem:[%s587 + $0x78] sm:$0xff]
        %604 = vmatpush.msra.mxu0 %v603
        %605 = vmatpush.msra.mxu0 %v602
        %606 = vmatpush.msra.mxu0 %v601
        %607 = vmatpush.msra.mxu0 %v600
        %608 = vmatpush.msra.mxu0 %v599
        %609 = vmatpush.msra.mxu0 %v598
        %610 = vmatpush.msra.mxu0 %v597
        %611 = vmatpush.msra.mxu0 %v596
        %612 = vmatpush.msra.mxu0 %v595
        %613 = vmatpush.msra.mxu0 %v594
        %614 = vmatpush.msra.mxu0 %v593
        %615 = vmatpush.msra.mxu0 %v592
        %616 = vmatpush.msra.mxu0 %v591
        %617 = vmatpush.msra.mxu0 %v590
        %618 = vmatpush.msra.mxu0 %v589
        %619 = vmatpush.msra.mxu0 %v588
        %620 = vmatmul.f32.gmra.mxu0 %v557
        %v621 = vpop.f32.mrf.mxu0
        %v622 = vadd.f32 0.0, %v621
        %623 = vmatmul.f32.gmra.mxu0 %v560
        %v624 = vpop.f32.mrf.mxu0
        %v625 = vadd.f32 0.0, %v624
        %626 = vmatmul.f32.gmra.mxu0 %v563
        %v627 = vpop.f32.mrf.mxu0
        %v628 = vadd.f32 0.0, %v627
        %629 = vmatmul.f32.gmra.mxu0 %v566
        %v630 = vpop.f32.mrf.mxu0
        %v631 = vadd.f32 0.0, %v630
        %632 = vmatmul.f32.gmra.mxu0 %v569
        %v633 = vpop.f32.mrf.mxu0
        %v634 = vadd.f32 0.0, %v633
        %635 = vmatmul.f32.gmra.mxu0 %v572
        %v636 = vpop.f32.mrf.mxu0
        %v637 = vadd.f32 0.0, %v636
        %638 = vmatmul.f32.gmra.mxu0 %v575
        %v639 = vpop.f32.mrf.mxu0
        %v640 = vadd.f32 0.0, %v639
        %641 = vmatmul.f32.gmra.mxu0 %v578
        %v642 = vpop.f32.mrf.mxu0
        %v643 = vadd.f32 0.0, %v642
        %644 = vdwg.mxu0
        %v645 = vadd.f32 %v531, %v622
        %v646 = vadd.f32 %v534, %v625
        %v647 = vadd.f32 %v537, %v628
        %v648 = vadd.f32 %v540, %v631
        %v649 = vadd.f32 %v543, %v634
        %v650 = vadd.f32 %v546, %v637
        %v651 = vadd.f32 %v549, %v640
        %v652 = vadd.f32 %v552, %v643
        %s653 = scalar_lea.vmem [#allocation6], 384
        %v654 = vld [vmem:[%s653] sm:$0xff]
        %v655 = vld [vmem:[%s653 + $0x8] sm:$0xff]
        %v656 = vld [vmem:[%s653 + $0x10] sm:$0xff]
        %v657 = vld [vmem:[%s653 + $0x18] sm:$0xff]
        %v658 = vld [vmem:[%s653 + $0x20] sm:$0xff]
        %v659 = vld [vmem:[%s653 + $0x28] sm:$0xff]
        %v660 = vld [vmem:[%s653 + $0x30] sm:$0xff]
        %v661 = vld [vmem:[%s653 + $0x38] sm:$0xff]
        %v662 = vld [vmem:[%s653 + $0x40] sm:$0xff]
        %v663 = vld [vmem:[%s653 + $0x48] sm:$0xff]
        %v664 = vld [vmem:[%s653 + $0x50] sm:$0xff]
        %v665 = vld [vmem:[%s653 + $0x58] sm:$0xff]
        %v666 = vld [vmem:[%s653 + $0x60] sm:$0xff]
        %v667 = vld [vmem:[%s653 + $0x68] sm:$0xff]
        %v668 = vld [vmem:[%s653 + $0x70] sm:$0xff]
        %v669 = vld [vmem:[%s653 + $0x78] sm:$0xff]
        %670 = vmatpush.msra.mxu0 %v669
        %671 = vmatpush.msra.mxu0 %v668
        %672 = vmatpush.msra.mxu0 %v667
        %673 = vmatpush.msra.mxu0 %v666
        %674 = vmatpush.msra.mxu0 %v665
        %675 = vmatpush.msra.mxu0 %v664
        %676 = vmatpush.msra.mxu0 %v663
        %677 = vmatpush.msra.mxu0 %v662
        %678 = vmatpush.msra.mxu0 %v661
        %679 = vmatpush.msra.mxu0 %v660
        %680 = vmatpush.msra.mxu0 %v659
        %681 = vmatpush.msra.mxu0 %v658
        %682 = vmatpush.msra.mxu0 %v657
        %683 = vmatpush.msra.mxu0 %v656
        %684 = vmatpush.msra.mxu0 %v655
        %685 = vmatpush.msra.mxu0 %v654
        %686 = vmatmul.f32.gmra.mxu0 %v372
        %v687 = vpop.f32.mrf.mxu0
        %v688 = vadd.f32 0.0, %v687
        %689 = vmatmul.f32.gmra.mxu0 %v374
        %v690 = vpop.f32.mrf.mxu0
        %v691 = vadd.f32 0.0, %v690
        %692 = vmatmul.f32.gmra.mxu0 %v376
        %v693 = vpop.f32.mrf.mxu0
        %v694 = vadd.f32 0.0, %v693
        %695 = vmatmul.f32.gmra.mxu0 %v378
        %v696 = vpop.f32.mrf.mxu0
        %v697 = vadd.f32 0.0, %v696
        %698 = vmatmul.f32.gmra.mxu0 %v380
        %v699 = vpop.f32.mrf.mxu0
        %v700 = vadd.f32 0.0, %v699
        %701 = vmatmul.f32.gmra.mxu0 %v382
        %v702 = vpop.f32.mrf.mxu0
        %v703 = vadd.f32 0.0, %v702
        %704 = vmatmul.f32.gmra.mxu0 %v384
        %v705 = vpop.f32.mrf.mxu0
        %v706 = vadd.f32 0.0, %v705
        %707 = vmatmul.f32.gmra.mxu0 %v386
        %v708 = vpop.f32.mrf.mxu0
        %v709 = vadd.f32 0.0, %v708
        %710 = vdwg.mxu0
        %v711 = vadd.f32 %v645, %v688
        %v712 = vadd.f32 %v646, %v691
        %v713 = vadd.f32 %v647, %v694
        %v714 = vadd.f32 %v648, %v697
        %v715 = vadd.f32 %v649, %v700
        %v716 = vadd.f32 %v650, %v703
        %v717 = vadd.f32 %v651, %v706
        %v718 = vadd.f32 %v652, %v709
        %v721 = vrot.slane %v386, 1
        %v722 = vrot.slane %v387, 1
        %v723 = vsel %vm422, %v721, %v722
        %s725 = scalar_lea.vmem [#allocation6], 512
        %v726 = vld [vmem:[%s725] sm:$0xff]
        %v727 = vld [vmem:[%s725 + $0x8] sm:$0xff]
        %v728 = vld [vmem:[%s725 + $0x10] sm:$0xff]
        %v729 = vld [vmem:[%s725 + $0x18] sm:$0xff]
        %v730 = vld [vmem:[%s725 + $0x20] sm:$0xff]
        %v731 = vld [vmem:[%s725 + $0x28] sm:$0xff]
        %v732 = vld [vmem:[%s725 + $0x30] sm:$0xff]
        %v733 = vld [vmem:[%s725 + $0x38] sm:$0xff]
        %v734 = vld [vmem:[%s725 + $0x40] sm:$0xff]
        %v735 = vld [vmem:[%s725 + $0x48] sm:$0xff]
        %v736 = vld [vmem:[%s725 + $0x50] sm:$0xff]
        %v737 = vld [vmem:[%s725 + $0x58] sm:$0xff]
        %v738 = vld [vmem:[%s725 + $0x60] sm:$0xff]
        %v739 = vld [vmem:[%s725 + $0x68] sm:$0xff]
        %v740 = vld [vmem:[%s725 + $0x70] sm:$0xff]
        %v741 = vld [vmem:[%s725 + $0x78] sm:$0xff]
        %742 = vmatpush.msra.mxu0 %v741
        %743 = vmatpush.msra.mxu0 %v740
        %744 = vmatpush.msra.mxu0 %v739
        %745 = vmatpush.msra.mxu0 %v738
        %746 = vmatpush.msra.mxu0 %v737
        %747 = vmatpush.msra.mxu0 %v736
        %748 = vmatpush.msra.mxu0 %v735
        %749 = vmatpush.msra.mxu0 %v734
        %750 = vmatpush.msra.mxu0 %v733
        %751 = vmatpush.msra.mxu0 %v732
        %752 = vmatpush.msra.mxu0 %v731
        %753 = vmatpush.msra.mxu0 %v730
        %754 = vmatpush.msra.mxu0 %v729
        %755 = vmatpush.msra.mxu0 %v728
        %756 = vmatpush.msra.mxu0 %v727
        %757 = vmatpush.msra.mxu0 %v726
        %758 = vmatmul.f32.gmra.mxu0 %v428
        %v759 = vpop.f32.mrf.mxu0
        %v760 = vadd.f32 0.0, %v759
        %761 = vmatmul.f32.gmra.mxu0 %v431
        %v762 = vpop.f32.mrf.mxu0
        %v763 = vadd.f32 0.0, %v762
        %764 = vmatmul.f32.gmra.mxu0 %v434
        %v765 = vpop.f32.mrf.mxu0
        %v766 = vadd.f32 0.0, %v765
        %767 = vmatmul.f32.gmra.mxu0 %v437
        %v768 = vpop.f32.mrf.mxu0
        %v769 = vadd.f32 0.0, %v768
        %770 = vmatmul.f32.gmra.mxu0 %v440
        %v771 = vpop.f32.mrf.mxu0
        %v772 = vadd.f32 0.0, %v771
        %773 = vmatmul.f32.gmra.mxu0 %v443
        %v774 = vpop.f32.mrf.mxu0
        %v775 = vadd.f32 0.0, %v774
        %776 = vmatmul.f32.gmra.mxu0 %v446
        %v777 = vpop.f32.mrf.mxu0
        %v778 = vadd.f32 0.0, %v777
        %779 = vmatmul.f32.gmra.mxu0 %v723
        %v780 = vpop.f32.mrf.mxu0
        %v781 = vadd.f32 0.0, %v780
        %782 = vdwg.mxu0
        %v783 = vadd.f32 %v711, %v760
        %v784 = vadd.f32 %v712, %v763
        %v785 = vadd.f32 %v713, %v766
        %v786 = vadd.f32 %v714, %v769
        %v787 = vadd.f32 %v715, %v772
        %v788 = vadd.f32 %v716, %v775
        %v789 = vadd.f32 %v717, %v778
        %v790 = vadd.f32 %v718, %v781
        %v791 = vrot.slane %v386, 2
        %v792 = vrot.slane %v387, 2
        %v793 = vsel %vm554, %v791, %v792
        %s795 = scalar_lea.vmem [#allocation6], 640
        %v796 = vld [vmem:[%s795] sm:$0xff]
        %v797 = vld [vmem:[%s795 + $0x8] sm:$0xff]
        %v798 = vld [vmem:[%s795 + $0x10] sm:$0xff]
        %v799 = vld [vmem:[%s795 + $0x18] sm:$0xff]
        %v800 = vld [vmem:[%s795 + $0x20] sm:$0xff]
        %v801 = vld [vmem:[%s795 + $0x28] sm:$0xff]
        %v802 = vld [vmem:[%s795 + $0x30] sm:$0xff]
        %v803 = vld [vmem:[%s795 + $0x38] sm:$0xff]
        %v804 = vld [vmem:[%s795 + $0x40] sm:$0xff]
        %v805 = vld [vmem:[%s795 + $0x48] sm:$0xff]
        %v806 = vld [vmem:[%s795 + $0x50] sm:$0xff]
        %v807 = vld [vmem:[%s795 + $0x58] sm:$0xff]
        %v808 = vld [vmem:[%s795 + $0x60] sm:$0xff]
        %v809 = vld [vmem:[%s795 + $0x68] sm:$0xff]
        %v810 = vld [vmem:[%s795 + $0x70] sm:$0xff]
        %v811 = vld [vmem:[%s795 + $0x78] sm:$0xff]
        %812 = vmatpush.msra.mxu0 %v811
        %813 = vmatpush.msra.mxu0 %v810
        %814 = vmatpush.msra.mxu0 %v809
        %815 = vmatpush.msra.mxu0 %v808
        %816 = vmatpush.msra.mxu0 %v807
        %817 = vmatpush.msra.mxu0 %v806
        %818 = vmatpush.msra.mxu0 %v805
        %819 = vmatpush.msra.mxu0 %v804
        %820 = vmatpush.msra.mxu0 %v803
        %821 = vmatpush.msra.mxu0 %v802
        %822 = vmatpush.msra.mxu0 %v801
        %823 = vmatpush.msra.mxu0 %v800
        %824 = vmatpush.msra.mxu0 %v799
        %825 = vmatpush.msra.mxu0 %v798
        %826 = vmatpush.msra.mxu0 %v797
        %827 = vmatpush.msra.mxu0 %v796
        %828 = vmatmul.f32.gmra.mxu0 %v560
        %v829 = vpop.f32.mrf.mxu0
        %v830 = vadd.f32 0.0, %v829
        %831 = vmatmul.f32.gmra.mxu0 %v563
        %v832 = vpop.f32.mrf.mxu0
        %v833 = vadd.f32 0.0, %v832
        %834 = vmatmul.f32.gmra.mxu0 %v566
        %v835 = vpop.f32.mrf.mxu0
        %v836 = vadd.f32 0.0, %v835
        %837 = vmatmul.f32.gmra.mxu0 %v569
        %v838 = vpop.f32.mrf.mxu0
        %v839 = vadd.f32 0.0, %v838
        %840 = vmatmul.f32.gmra.mxu0 %v572
        %v841 = vpop.f32.mrf.mxu0
        %v842 = vadd.f32 0.0, %v841
        %843 = vmatmul.f32.gmra.mxu0 %v575
        %v844 = vpop.f32.mrf.mxu0
        %v845 = vadd.f32 0.0, %v844
        %846 = vmatmul.f32.gmra.mxu0 %v578
        %v847 = vpop.f32.mrf.mxu0
        %v848 = vadd.f32 0.0, %v847
        %849 = vmatmul.f32.gmra.mxu0 %v793
        %v850 = vpop.f32.mrf.mxu0
        %v851 = vadd.f32 0.0, %v850
        %852 = vdwg.mxu0
        %v853 = vadd.f32 %v783, %v830
        %v854 = vadd.f32 %v784, %v833
        %v855 = vadd.f32 %v785, %v836
        %v856 = vadd.f32 %v786, %v839
        %v857 = vadd.f32 %v787, %v842
        %v858 = vadd.f32 %v788, %v845
        %v859 = vadd.f32 %v789, %v848
        %v860 = vadd.f32 %v790, %v851
        %s861 = scalar_lea.vmem [#allocation6], 768
        %v862 = vld [vmem:[%s861] sm:$0xff]
        %v863 = vld [vmem:[%s861 + $0x8] sm:$0xff]
        %v864 = vld [vmem:[%s861 + $0x10] sm:$0xff]
        %v865 = vld [vmem:[%s861 + $0x18] sm:$0xff]
        %v866 = vld [vmem:[%s861 + $0x20] sm:$0xff]
        %v867 = vld [vmem:[%s861 + $0x28] sm:$0xff]
        %v868 = vld [vmem:[%s861 + $0x30] sm:$0xff]
        %v869 = vld [vmem:[%s861 + $0x38] sm:$0xff]
        %v870 = vld [vmem:[%s861 + $0x40] sm:$0xff]
        %v871 = vld [vmem:[%s861 + $0x48] sm:$0xff]
        %v872 = vld [vmem:[%s861 + $0x50] sm:$0xff]
        %v873 = vld [vmem:[%s861 + $0x58] sm:$0xff]
        %v874 = vld [vmem:[%s861 + $0x60] sm:$0xff]
        %v875 = vld [vmem:[%s861 + $0x68] sm:$0xff]
        %v876 = vld [vmem:[%s861 + $0x70] sm:$0xff]
        %v877 = vld [vmem:[%s861 + $0x78] sm:$0xff]
        %878 = vmatpush.msra.mxu0 %v877
        %879 = vmatpush.msra.mxu0 %v876
        %880 = vmatpush.msra.mxu0 %v875
        %881 = vmatpush.msra.mxu0 %v874
        %882 = vmatpush.msra.mxu0 %v873
        %883 = vmatpush.msra.mxu0 %v872
        %884 = vmatpush.msra.mxu0 %v871
        %885 = vmatpush.msra.mxu0 %v870
        %886 = vmatpush.msra.mxu0 %v869
        %887 = vmatpush.msra.mxu0 %v868
        %888 = vmatpush.msra.mxu0 %v867
        %889 = vmatpush.msra.mxu0 %v866
        %890 = vmatpush.msra.mxu0 %v865
        %891 = vmatpush.msra.mxu0 %v864
        %892 = vmatpush.msra.mxu0 %v863
        %893 = vmatpush.msra.mxu0 %v862
        %894 = vmatmul.f32.gmra.mxu0 %v374
        %v895 = vpop.f32.mrf.mxu0
        %v896 = vadd.f32 0.0, %v895
        %897 = vmatmul.f32.gmra.mxu0 %v376
        %v898 = vpop.f32.mrf.mxu0
        %v899 = vadd.f32 0.0, %v898
        %900 = vmatmul.f32.gmra.mxu0 %v378
        %v901 = vpop.f32.mrf.mxu0
        %v902 = vadd.f32 0.0, %v901
        %903 = vmatmul.f32.gmra.mxu0 %v380
        %v904 = vpop.f32.mrf.mxu0
        %v905 = vadd.f32 0.0, %v904
        %906 = vmatmul.f32.gmra.mxu0 %v382
        %v907 = vpop.f32.mrf.mxu0
        %v908 = vadd.f32 0.0, %v907
        %909 = vmatmul.f32.gmra.mxu0 %v384
        %v910 = vpop.f32.mrf.mxu0
        %v911 = vadd.f32 0.0, %v910
        %912 = vmatmul.f32.gmra.mxu0 %v386
        %v913 = vpop.f32.mrf.mxu0
        %v914 = vadd.f32 0.0, %v913
        %915 = vmatmul.f32.gmra.mxu0 %v388
        %v916 = vpop.f32.mrf.mxu0
        %v917 = vadd.f32 0.0, %v916
        %918 = vdwg.mxu0
        %v919 = vadd.f32 %v853, %v896
        %v920 = vadd.f32 %v854, %v899
        %v921 = vadd.f32 %v855, %v902
        %v922 = vadd.f32 %v856, %v905
        %v923 = vadd.f32 %v857, %v908
        %v924 = vadd.f32 %v858, %v911
        %v925 = vadd.f32 %v859, %v914
        %v926 = vadd.f32 %v860, %v917
        %v929 = vrot.slane %v388, 1
        %v930 = vrot.slane %v389, 1
        %v931 = vsel %vm422, %v929, %v930
        %s933 = scalar_lea.vmem [#allocation6], 896
        %v934 = vld [vmem:[%s933] sm:$0xff]
        %v935 = vld [vmem:[%s933 + $0x8] sm:$0xff]
        %v936 = vld [vmem:[%s933 + $0x10] sm:$0xff]
        %v937 = vld [vmem:[%s933 + $0x18] sm:$0xff]
        %v938 = vld [vmem:[%s933 + $0x20] sm:$0xff]
        %v939 = vld [vmem:[%s933 + $0x28] sm:$0xff]
        %v940 = vld [vmem:[%s933 + $0x30] sm:$0xff]
        %v941 = vld [vmem:[%s933 + $0x38] sm:$0xff]
        %v942 = vld [vmem:[%s933 + $0x40] sm:$0xff]
        %v943 = vld [vmem:[%s933 + $0x48] sm:$0xff]
        %v944 = vld [vmem:[%s933 + $0x50] sm:$0xff]
        %v945 = vld [vmem:[%s933 + $0x58] sm:$0xff]
        %v946 = vld [vmem:[%s933 + $0x60] sm:$0xff]
        %v947 = vld [vmem:[%s933 + $0x68] sm:$0xff]
        %v948 = vld [vmem:[%s933 + $0x70] sm:$0xff]
        %v949 = vld [vmem:[%s933 + $0x78] sm:$0xff]
        %950 = vmatpush.msra.mxu0 %v949
        %951 = vmatpush.msra.mxu0 %v948
        %952 = vmatpush.msra.mxu0 %v947
        %953 = vmatpush.msra.mxu0 %v946
        %954 = vmatpush.msra.mxu0 %v945
        %955 = vmatpush.msra.mxu0 %v944
        %956 = vmatpush.msra.mxu0 %v943
        %957 = vmatpush.msra.mxu0 %v942
        %958 = vmatpush.msra.mxu0 %v941
        %959 = vmatpush.msra.mxu0 %v940
        %960 = vmatpush.msra.mxu0 %v939
        %961 = vmatpush.msra.mxu0 %v938
        %962 = vmatpush.msra.mxu0 %v937
        %963 = vmatpush.msra.mxu0 %v936
        %964 = vmatpush.msra.mxu0 %v935
        %965 = vmatpush.msra.mxu0 %v934
        %966 = vmatmul.f32.gmra.mxu0 %v431
        %v967 = vpop.f32.mrf.mxu0
        %v968 = vadd.f32 0.0, %v967
        %969 = vmatmul.f32.gmra.mxu0 %v434
        %v970 = vpop.f32.mrf.mxu0
        %v971 = vadd.f32 0.0, %v970
        %972 = vmatmul.f32.gmra.mxu0 %v437
        %v973 = vpop.f32.mrf.mxu0
        %v974 = vadd.f32 0.0, %v973
        %975 = vmatmul.f32.gmra.mxu0 %v440
        %v976 = vpop.f32.mrf.mxu0
        %v977 = vadd.f32 0.0, %v976
        %978 = vmatmul.f32.gmra.mxu0 %v443
        %v979 = vpop.f32.mrf.mxu0
        %v980 = vadd.f32 0.0, %v979
        %981 = vmatmul.f32.gmra.mxu0 %v446
        %v982 = vpop.f32.mrf.mxu0
        %v983 = vadd.f32 0.0, %v982
        %984 = vmatmul.f32.gmra.mxu0 %v723
        %v985 = vpop.f32.mrf.mxu0
        %v986 = vadd.f32 0.0, %v985
        %987 = vmatmul.f32.gmra.mxu0 %v931
        %v988 = vpop.f32.mrf.mxu0
        %v989 = vadd.f32 0.0, %v988
        %990 = vdwg.mxu0
        %v991 = vadd.f32 %v919, %v968
        %v992 = vadd.f32 %v920, %v971
        %v993 = vadd.f32 %v921, %v974
        %v994 = vadd.f32 %v922, %v977
        %v995 = vadd.f32 %v923, %v980
        %v996 = vadd.f32 %v924, %v983
        %v997 = vadd.f32 %v925, %v986
        %v998 = vadd.f32 %v926, %v989
        %v999 = vrot.slane %v388, 2
        %v1000 = vrot.slane %v389, 2
        %v1001 = vsel %vm554, %v999, %v1000
        %s1003 = scalar_lea.vmem [#allocation6], 1024
        %v1004 = vld [vmem:[%s1003] sm:$0xff]
        %v1005 = vld [vmem:[%s1003 + $0x8] sm:$0xff]
        %v1006 = vld [vmem:[%s1003 + $0x10] sm:$0xff]
        %v1007 = vld [vmem:[%s1003 + $0x18] sm:$0xff]
        %v1008 = vld [vmem:[%s1003 + $0x20] sm:$0xff]
        %v1009 = vld [vmem:[%s1003 + $0x28] sm:$0xff]
        %v1010 = vld [vmem:[%s1003 + $0x30] sm:$0xff]
        %v1011 = vld [vmem:[%s1003 + $0x38] sm:$0xff]
        %v1012 = vld [vmem:[%s1003 + $0x40] sm:$0xff]
        %v1013 = vld [vmem:[%s1003 + $0x48] sm:$0xff]
        %v1014 = vld [vmem:[%s1003 + $0x50] sm:$0xff]
        %v1015 = vld [vmem:[%s1003 + $0x58] sm:$0xff]
        %v1016 = vld [vmem:[%s1003 + $0x60] sm:$0xff]
        %v1017 = vld [vmem:[%s1003 + $0x68] sm:$0xff]
        %v1018 = vld [vmem:[%s1003 + $0x70] sm:$0xff]
        %v1019 = vld [vmem:[%s1003 + $0x78] sm:$0xff]
        %1020 = vmatpush.msra.mxu0 %v1019
        %1021 = vmatpush.msra.mxu0 %v1018
        %1022 = vmatpush.msra.mxu0 %v1017
        %1023 = vmatpush.msra.mxu0 %v1016
        %1024 = vmatpush.msra.mxu0 %v1015
        %1025 = vmatpush.msra.mxu0 %v1014
        %1026 = vmatpush.msra.mxu0 %v1013
        %1027 = vmatpush.msra.mxu0 %v1012
        %1028 = vmatpush.msra.mxu0 %v1011
        %1029 = vmatpush.msra.mxu0 %v1010
        %1030 = vmatpush.msra.mxu0 %v1009
        %1031 = vmatpush.msra.mxu0 %v1008
        %1032 = vmatpush.msra.mxu0 %v1007
        %1033 = vmatpush.msra.mxu0 %v1006
        %1034 = vmatpush.msra.mxu0 %v1005
        %1035 = vmatpush.msra.mxu0 %v1004
        %1036 = vmatmul.f32.gmra.mxu0 %v563
        %v1037 = vpop.f32.mrf.mxu0
        %v1038 = vadd.f32 0.0, %v1037
        %1039 = vmatmul.f32.gmra.mxu0 %v566
        %v1040 = vpop.f32.mrf.mxu0
        %v1041 = vadd.f32 0.0, %v1040
        %1042 = vmatmul.f32.gmra.mxu0 %v569
        %v1043 = vpop.f32.mrf.mxu0
        %v1044 = vadd.f32 0.0, %v1043
        %1045 = vmatmul.f32.gmra.mxu0 %v572
        %v1046 = vpop.f32.mrf.mxu0
        %v1047 = vadd.f32 0.0, %v1046
        %1048 = vmatmul.f32.gmra.mxu0 %v575
        %v1049 = vpop.f32.mrf.mxu0
        %v1050 = vadd.f32 0.0, %v1049
        %1051 = vmatmul.f32.gmra.mxu0 %v578
        %v1052 = vpop.f32.mrf.mxu0
        %v1053 = vadd.f32 0.0, %v1052
        %1054 = vmatmul.f32.gmra.mxu0 %v793
        %v1055 = vpop.f32.mrf.mxu0
        %v1056 = vadd.f32 0.0, %v1055
        %1057 = vmatmul.f32.gmra.mxu0 %v1001
        %v1058 = vpop.f32.mrf.mxu0
        %v1059 = vadd.f32 0.0, %v1058
        %1060 = vdwg.mxu0
        %v1061 = vadd.f32 %v991, %v1038
        %v1062 = vadd.f32 %v992, %v1041
        %v1063 = vadd.f32 %v993, %v1044
        %v1064 = vadd.f32 %v994, %v1047
        %v1065 = vadd.f32 %v995, %v1050
        %v1066 = vadd.f32 %v996, %v1053
        %v1067 = vadd.f32 %v997, %v1056
        %v1068 = vadd.f32 %v998, %v1059
        %v1069 = vadd.f32 %v1061, %v1062
        %v1070 = vadd.f32 %v1069, %v1063
        %v1071 = vadd.f32 %v1070, %v1064
        %v1072 = vadd.f32 %v1071, %v1065
        %v1073 = vadd.f32 %v1072, %v1066
        %v1074 = vadd.f32 %v1073, %v1067
        %v1075 = vadd.f32 %v1074, %v1068
        %v1076 = vrot.slane %v1075, 4
        %v1077 = vadd.f32 %v1075, %v1076
        %v1078 = vrot.slane %v1077, 2
        %v1079 = vadd.f32 %v1077, %v1078
        %v1080 = vrot.slane %v1079, 1
        %v1081 = vadd.f32 %v1079, %v1080
        %v1082 = vmul.f32 %v1061, %v1061
        %v1083 = vmul.f32 %v1062, %v1062
        %v1084 = vmul.f32 %v1063, %v1063
        %v1085 = vmul.f32 %v1064, %v1064
        %v1086 = vmul.f32 %v1065, %v1065
        %v1087 = vmul.f32 %v1066, %v1066
        %v1088 = vmul.f32 %v1067, %v1067
        %v1089 = vmul.f32 %v1068, %v1068
        %v1090 = vadd.f32 %v1082, %v1083
        %v1091 = vadd.f32 %v1090, %v1084
        %v1092 = vadd.f32 %v1091, %v1085
        %v1093 = vadd.f32 %v1092, %v1086
        %v1094 = vadd.f32 %v1093, %v1087
        %v1095 = vadd.f32 %v1094, %v1088
        %v1096 = vadd.f32 %v1095, %v1089
        %v1097 = vrot.slane %v1096, 4
        %v1098 = vadd.f32 %v1096, %v1097
        %v1099 = vrot.slane %v1098, 2
        %v1100 = vadd.f32 %v1098, %v1099
        %v1101 = vrot.slane %v1100, 1
        %v1102 = vadd.f32 %v1100, %v1101
        %1104 = vrot.lane.b32.xlu0 %v1081, 112
        %v1105 = vpop.permute.xlu0 %1104
        %v1107 = vadd.f32 %v1081, %v1105
        %1108 = vrot.lane.b32.xlu0 %v1081, 96
        %v1109 = vpop.permute.xlu0 %1108
        %v1111 = vadd.f32 %v1107, %v1109
        %1112 = vrot.lane.b32.xlu0 %v1081, 80
        %v1113 = vpop.permute.xlu0 %1112
        %v1115 = vadd.f32 %v1111, %v1113
        %1116 = vrot.lane.b32.xlu0 %v1081, 64
        %v1117 = vpop.permute.xlu0 %1116
        %v1119 = vadd.f32 %v1115, %v1117
        %1120 = vrot.lane.b32.xlu0 %v1081, 48
        %v1121 = vpop.permute.xlu0 %1120
        %v1123 = vadd.f32 %v1119, %v1121
        %1124 = vrot.lane.b32.xlu0 %v1081, 32
        %v1125 = vpop.permute.xlu0 %1124
        %v1127 = vadd.f32 %v1123, %v1125
        %1128 = vrot.lane.b32.xlu0 %v1081, 16
        %v1129 = vpop.permute.xlu0 %1128
        %v1131 = vadd.f32 %v1127, %v1129
        %v1132 = vmul.f32 %v1131, 0.001953125
        %1134 = vrot.lane.b32.xlu0 %v1102, 112
        %v1135 = vpop.permute.xlu0 %1134
        %v1137 = vadd.f32 %v1102, %v1135
        %1138 = vrot.lane.b32.xlu0 %v1102, 96
        %v1139 = vpop.permute.xlu0 %1138
        %v1141 = vadd.f32 %v1137, %v1139
        %1142 = vrot.lane.b32.xlu0 %v1102, 80
        %v1143 = vpop.permute.xlu0 %1142
        %v1145 = vadd.f32 %v1141, %v1143
        %1146 = vrot.lane.b32.xlu0 %v1102, 64
        %v1147 = vpop.permute.xlu0 %1146
        %v1149 = vadd.f32 %v1145, %v1147
        %1150 = vrot.lane.b32.xlu0 %v1102, 48
        %v1151 = vpop.permute.xlu0 %1150
        %v1153 = vadd.f32 %v1149, %v1151
        %1154 = vrot.lane.b32.xlu0 %v1102, 32
        %v1155 = vpop.permute.xlu0 %1154
        %v1157 = vadd.f32 %v1153, %v1155
        %1158 = vrot.lane.b32.xlu0 %v1102, 16
        %v1159 = vpop.permute.xlu0 %1158
        %v1161 = vadd.f32 %v1157, %v1159
        %v1162 = vmul.f32 %v1161, 0.001953125
        %v1163 = vmul.f32 %v1132, %v1132
        %v1164 = vsub.f32 %v1162, %v1163
        %v1165 = vadd.f32 %v1164, 1e-05
        %v1166 = vrsqrt.pop %v1165
        %v1167 = vmul.f32 %v1166, %v1165
        %v1168 = vmul.f32 %v1167, %v1166
        %v1169 = vmul.f32 0.5, %v1168
        %v1170 = vsub.f32 1.5, %v1169
        %v1171 = vmul.f32 %v1166, %v1170
        %vm1172 = vweird.f32 %v1165
        %vm1173 = vweird.f32 %v1166
        %vm1174 = vmor %vm1172, %vm1173
        %v1175 = vsel %vm1174, %v1166, %v1171
        %1177 = vrot.lane.b32.xlu0 %v1175, 16
        %v1178 = vpop.permute.xlu0 %1177
        %1180 = vrot.lane.b32.xlu0 %v1175, 32
        %v1181 = vpop.permute.xlu0 %1180
        %1183 = vrot.lane.b32.xlu0 %v1175, 48
        %v1184 = vpop.permute.xlu0 %1183
        %1186 = vrot.lane.b32.xlu0 %v1175, 64
        %v1187 = vpop.permute.xlu0 %1186
        %1189 = vrot.lane.b32.xlu0 %v1175, 80
        %v1190 = vpop.permute.xlu0 %1189
        %1192 = vrot.lane.b32.xlu0 %v1175, 96
        %v1193 = vpop.permute.xlu0 %1192
        %1195 = vrot.lane.b32.xlu0 %v1175, 112
        %v1196 = vpop.permute.xlu0 %1195
        %vm1198 = vcmask 130048
        %v1199 = vsel %vm1198, %v1175, %v1178
        %vm1200 = vcmask 261120
        %v1201 = vsel %vm1200, %v1199, %v1181
        %vm1202 = vcmask 392192
        %v1203 = vsel %vm1202, %v1201, %v1184
        %vm1204 = vcmask 523264
        %v1205 = vsel %vm1204, %v1203, %v1187
        %vm1206 = vcmask 654336
        %v1207 = vsel %vm1206, %v1205, %v1190
        %vm1208 = vcmask 785408
        %v1209 = vsel %vm1208, %v1207, %v1193
        %vm1210 = vcmask 916480
        %v1211 = vsel %vm1210, %v1209, %v1196
        %v1212 = vld [vmem:[%s3] sm:$0x1]
        %v1213 = vmul.f32 %v1211, %v1212
        %v1214 = vld [vmem:[%s4] sm:$0x1]
        %v1215 = vmul.f32 %v1132, %v1175
        %1217 = vrot.lane.b32.xlu0 %v1215, 16
        %v1218 = vpop.permute.xlu0 %1217
        %1220 = vrot.lane.b32.xlu0 %v1215, 32
        %v1221 = vpop.permute.xlu0 %1220
        %1223 = vrot.lane.b32.xlu0 %v1215, 48
        %v1224 = vpop.permute.xlu0 %1223
        %1226 = vrot.lane.b32.xlu0 %v1215, 64
        %v1227 = vpop.permute.xlu0 %1226
        %1229 = vrot.lane.b32.xlu0 %v1215, 80
        %v1230 = vpop.permute.xlu0 %1229
        %1232 = vrot.lane.b32.xlu0 %v1215, 96
        %v1233 = vpop.permute.xlu0 %1232
        %1235 = vrot.lane.b32.xlu0 %v1215, 112
        %v1236 = vpop.permute.xlu0 %1235
        %v1238 = vsel %vm1198, %v1215, %v1218
        %v1239 = vsel %vm1200, %v1238, %v1221
        %v1240 = vsel %vm1202, %v1239, %v1224
        %v1241 = vsel %vm1204, %v1240, %v1227
        %v1242 = vsel %vm1206, %v1241, %v1230
        %v1243 = vsel %vm1208, %v1242, %v1233
        %v1244 = vsel %vm1210, %v1243, %v1236
        %v1245 = vmul.f32 %v1244, %v1212
        %v1246 = vsub.f32 %v1214, %v1245
        %v1247 = vperm.slane %v1213, 0
        %v1248 = vmul.f32 %v1061, %v1247
        %v1249 = vmul.f32 %v1062, %v1247
        %v1250 = vmul.f32 %v1063, %v1247
        %v1251 = vmul.f32 %v1064, %v1247
        %v1252 = vmul.f32 %v1065, %v1247
        %v1253 = vmul.f32 %v1066, %v1247
        %v1254 = vmul.f32 %v1067, %v1247
        %v1255 = vmul.f32 %v1068, %v1247
        %v1257 = vperm.slane %v1246, 0
        %v1259 = vadd.f32 %v1248, %v1257
        %v1260 = vadd.f32 %v1249, %v1257
        %v1261 = vadd.f32 %v1250, %v1257
        %v1262 = vadd.f32 %v1251, %v1257
        %v1263 = vadd.f32 %v1252, %v1257
        %v1264 = vadd.f32 %v1253, %v1257
        %v1265 = vadd.f32 %v1254, %v1257
        %v1266 = vadd.f32 %v1255, %v1257
        %v1267 = vmax.f32 %v1259, 0.0
        %v1268 = vmax.f32 %v1260, 0.0
        %v1269 = vmax.f32 %v1261, 0.0
        %v1270 = vmax.f32 %v1262, 0.0
        %v1271 = vmax.f32 %v1263, 0.0
        %v1272 = vmax.f32 %v1264, 0.0
        %v1273 = vmax.f32 %v1265, 0.0
        %v1274 = vmax.f32 %v1266, 0.0
        %1275 = vst [vmem:[%s337 + $0x1] sm:$0xff] %v1267
        %1276 = vst [vmem:[%s337 + $0x11] sm:$0xff] %v1268
        %1277 = vst [vmem:[%s337 + $0x21] sm:$0xff] %v1269
        %1278 = vst [vmem:[%s337 + $0x31] sm:$0xff] %v1270
        %1279 = vst [vmem:[%s337 + $0x41] sm:$0xff] %v1271
        %1280 = vst [vmem:[%s337 + $0x51] sm:$0xff] %v1272
        %1281 = vst [vmem:[%s337 + $0x61] sm:$0xff] %v1273
        %1282 = vst [vmem:[%s337 + $0x71] sm:$0xff] %v1274
        %v1283 = vld [vmem:[#allocation2] sm:$0xff]
        %v1284 = vld [vmem:[#allocation2 + $0x8] sm:$0x3]
        %v1285 = vld [vmem:[#allocation2 + $0x10] sm:$0xff]
        %v1286 = vld [vmem:[#allocation2 + $0x18] sm:$0x3]
        %v1287 = vld [vmem:[#allocation2 + $0x20] sm:$0xff]
        %v1288 = vld [vmem:[#allocation2 + $0x28] sm:$0x3]
        %v1289 = vld [vmem:[#allocation2 + $0x30] sm:$0xff]
        %v1290 = vld [vmem:[#allocation2 + $0x38] sm:$0x3]
        %v1291 = vld [vmem:[#allocation2 + $0x40] sm:$0xff]
        %v1292 = vld [vmem:[#allocation2 + $0x48] sm:$0x3]
        %v1293 = vld [vmem:[#allocation2 + $0x50] sm:$0xff]
        %v1294 = vld [vmem:[#allocation2 + $0x58] sm:$0x3]
        %v1295 = vld [vmem:[#allocation2 + $0x60] sm:$0xff]
        %v1296 = vld [vmem:[#allocation2 + $0x68] sm:$0x3]
        %v1297 = vld [vmem:[#allocation2 + $0x70] sm:$0xff]
        %v1298 = vld [vmem:[#allocation2 + $0x78] sm:$0x3]
        %v1299 = vld [vmem:[#allocation2 + $0x80] sm:$0xff]
        %v1300 = vld [vmem:[#allocation2 + $0x88] sm:$0x3]
        %v1301 = vld [vmem:[#allocation2 + $0x90] sm:$0xff]
        %v1302 = vld [vmem:[#allocation2 + $0x98] sm:$0x3]
        %v1303 = vld [vmem:[#allocation8] sm:$0xff]
        %v1304 = vld [vmem:[#allocation8 + $0x8] sm:$0xff]
        %v1305 = vld [vmem:[#allocation8 + $0x10] sm:$0xff]
        %v1306 = vld [vmem:[#allocation8 + $0x18] sm:$0xff]
        %v1307 = vld [vmem:[#allocation8 + $0x20] sm:$0xff]
        %v1308 = vld [vmem:[#allocation8 + $0x28] sm:$0xff]
        %v1309 = vld [vmem:[#allocation8 + $0x30] sm:$0xff]
        %v1310 = vld [vmem:[#allocation8 + $0x38] sm:$0xff]
        %v1311 = vld [vmem:[#allocation8 + $0x40] sm:$0xff]
        %v1312 = vld [vmem:[#allocation8 + $0x48] sm:$0xff]
        %v1313 = vld [vmem:[#allocation8 + $0x50] sm:$0xff]
        %v1314 = vld [vmem:[#allocation8 + $0x58] sm:$0xff]
        %v1315 = vld [vmem:[#allocation8 + $0x60] sm:$0xff]
        %v1316 = vld [vmem:[#allocation8 + $0x68] sm:$0xff]
        %v1317 = vld [vmem:[#allocation8 + $0x70] sm:$0xff]
        %v1318 = vld [vmem:[#allocation8 + $0x78] sm:$0xff]
        %v1335 = vrot.slane %v1283, 1
        %v1336 = vrot.slane %v1284, 1
        %v1337 = vsel %vm422, %v1335, %v1336
        %v1338 = vrot.slane %v1285, 1
        %v1339 = vrot.slane %v1286, 1
        %v1340 = vsel %vm422, %v1338, %v1339
        %v1341 = vrot.slane %v1287, 1
        %v1342 = vrot.slane %v1288, 1
        %v1343 = vsel %vm422, %v1341, %v1342
        %v1344 = vrot.slane %v1289, 1
        %v1345 = vrot.slane %v1290, 1
        %v1346 = vsel %vm422, %v1344, %v1345
        %v1347 = vrot.slane %v1291, 1
        %v1348 = vrot.slane %v1292, 1
        %v1349 = vsel %vm422, %v1347, %v1348
        %v1350 = vrot.slane %v1293, 1
        %v1351 = vrot.slane %v1294, 1
        %v1352 = vsel %vm422, %v1350, %v1351
        %v1353 = vrot.slane %v1295, 1
        %v1354 = vrot.slane %v1296, 1
        %v1355 = vsel %vm422, %v1353, %v1354
        %v1356 = vrot.slane %v1297, 1
        %v1357 = vrot.slane %v1298, 1
        %v1358 = vsel %vm422, %v1356, %v1357
        %s1367 = scalar_lea.vmem [#allocation8], 128
        %v1368 = vld [vmem:[%s1367] sm:$0xff]
        %v1369 = vld [vmem:[%s1367 + $0x8] sm:$0xff]
        %v1370 = vld [vmem:[%s1367 + $0x10] sm:$0xff]
        %v1371 = vld [vmem:[%s1367 + $0x18] sm:$0xff]
        %v1372 = vld [vmem:[%s1367 + $0x20] sm:$0xff]
        %v1373 = vld [vmem:[%s1367 + $0x28] sm:$0xff]
        %v1374 = vld [vmem:[%s1367 + $0x30] sm:$0xff]
        %v1375 = vld [vmem:[%s1367 + $0x38] sm:$0xff]
        %v1376 = vld [vmem:[%s1367 + $0x40] sm:$0xff]
        %v1377 = vld [vmem:[%s1367 + $0x48] sm:$0xff]
        %v1378 = vld [vmem:[%s1367 + $0x50] sm:$0xff]
        %v1379 = vld [vmem:[%s1367 + $0x58] sm:$0xff]
        %v1380 = vld [vmem:[%s1367 + $0x60] sm:$0xff]
        %v1381 = vld [vmem:[%s1367 + $0x68] sm:$0xff]
        %v1382 = vld [vmem:[%s1367 + $0x70] sm:$0xff]
        %v1383 = vld [vmem:[%s1367 + $0x78] sm:$0xff]
        %1384 = vmatpush.msra.mxu0 %v1383
        %1385 = vmatpush.msra.mxu0 %v1382
        %1386 = vmatpush.msra.mxu0 %v1381
        %1387 = vmatpush.msra.mxu0 %v1380
        %1388 = vmatpush.msra.mxu0 %v1379
        %1389 = vmatpush.msra.mxu0 %v1378
        %1390 = vmatpush.msra.mxu0 %v1377
        %1391 = vmatpush.msra.mxu0 %v1376
        %1392 = vmatpush.msra.mxu0 %v1375
        %1393 = vmatpush.msra.mxu0 %v1374
        %1394 = vmatpush.msra.mxu0 %v1373
        %1395 = vmatpush.msra.mxu0 %v1372
        %1396 = vmatpush.msra.mxu0 %v1371
        %1397 = vmatpush.msra.mxu0 %v1370
        %1398 = vmatpush.msra.mxu0 %v1369
        %1399 = vmatpush.msra.mxu0 %v1368
        %1400 = vmatmul.f32.gmra.mxu0 %v1337
        %v1401 = vpop.f32.mrf.mxu0
        %v1402 = vadd.f32 0.0, %v1401
        %1403 = vmatmul.f32.gmra.mxu0 %v1340
        %v1404 = vpop.f32.mrf.mxu0
        %v1405 = vadd.f32 0.0, %v1404
        %1406 = vmatmul.f32.gmra.mxu0 %v1343
        %v1407 = vpop.f32.mrf.mxu0
        %v1408 = vadd.f32 0.0, %v1407
        %1409 = vmatmul.f32.gmra.mxu0 %v1346
        %v1410 = vpop.f32.mrf.mxu0
        %v1411 = vadd.f32 0.0, %v1410
        %1412 = vmatmul.f32.gmra.mxu0 %v1349
        %v1413 = vpop.f32.mrf.mxu0
        %v1414 = vadd.f32 0.0, %v1413
        %1415 = vmatmul.f32.gmra.mxu0 %v1352
        %v1416 = vpop.f32.mrf.mxu0
        %v1417 = vadd.f32 0.0, %v1416
        %1418 = vmatmul.f32.gmra.mxu0 %v1355
        %v1419 = vpop.f32.mrf.mxu0
        %v1420 = vadd.f32 0.0, %v1419
        %1421 = vmatmul.f32.gmra.mxu0 %v1358
        %v1422 = vpop.f32.mrf.mxu0
        %v1423 = vadd.f32 0.0, %v1422
        %1424 = vdwg.mxu0
        %1425 = vmatpush.msra.mxu0 %v1318
        %1426 = vmatpush.msra.mxu0 %v1317
        %1427 = vmatpush.msra.mxu0 %v1316
        %1428 = vmatpush.msra.mxu0 %v1315
        %1429 = vmatpush.msra.mxu0 %v1314
        %1430 = vmatpush.msra.mxu0 %v1313
        %1431 = vmatpush.msra.mxu0 %v1312
        %1432 = vmatpush.msra.mxu0 %v1311
        %1433 = vmatpush.msra.mxu0 %v1310
        %1434 = vmatpush.msra.mxu0 %v1309
        %1435 = vmatpush.msra.mxu0 %v1308
        %1436 = vmatpush.msra.mxu0 %v1307
        %1437 = vmatpush.msra.mxu0 %v1306
        %1438 = vmatpush.msra.mxu0 %v1305
        %1439 = vmatpush.msra.mxu0 %v1304
        %1440 = vmatpush.msra.mxu0 %v1303
        %1441 = vmatmul.f32.gmra.mxu0 %v1283
        %v1442 = vpop.f32.mrf.mxu0
        %v1443 = vadd.f32 %v1402, %v1442
        %1444 = vmatmul.f32.gmra.mxu0 %v1285
        %v1445 = vpop.f32.mrf.mxu0
        %v1446 = vadd.f32 %v1405, %v1445
        %1447 = vmatmul.f32.gmra.mxu0 %v1287
        %v1448 = vpop.f32.mrf.mxu0
        %v1449 = vadd.f32 %v1408, %v1448
        %1450 = vmatmul.f32.gmra.mxu0 %v1289
        %v1451 = vpop.f32.mrf.mxu0
        %v1452 = vadd.f32 %v1411, %v1451
        %1453 = vmatmul.f32.gmra.mxu0 %v1291
        %v1454 = vpop.f32.mrf.mxu0
        %v1455 = vadd.f32 %v1414, %v1454
        %1456 = vmatmul.f32.gmra.mxu0 %v1293
        %v1457 = vpop.f32.mrf.mxu0
        %v1458 = vadd.f32 %v1417, %v1457
        %1459 = vmatmul.f32.gmra.mxu0 %v1295
        %v1460 = vpop.f32.mrf.mxu0
        %v1461 = vadd.f32 %v1420, %v1460
        %1462 = vmatmul.f32.gmra.mxu0 %v1297
        %v1463 = vpop.f32.mrf.mxu0
        %v1464 = vadd.f32 %v1423, %v1463
        %1465 = vdwg.mxu0
        %v1466 = vrot.slane %v1283, 2
        %v1467 = vrot.slane %v1284, 2
        %v1468 = vsel %vm554, %v1466, %v1467
        %v1469 = vrot.slane %v1285, 2
        %v1470 = vrot.slane %v1286, 2
        %v1471 = vsel %vm554, %v1469, %v1470
        %v1472 = vrot.slane %v1287, 2
        %v1473 = vrot.slane %v1288, 2
        %v1474 = vsel %vm554, %v1472, %v1473
        %v1475 = vrot.slane %v1289, 2
        %v1476 = vrot.slane %v1290, 2
        %v1477 = vsel %vm554, %v1475, %v1476
        %v1478 = vrot.slane %v1291, 2
        %v1479 = vrot.slane %v1292, 2
        %v1480 = vsel %vm554, %v1478, %v1479
        %v1481 = vrot.slane %v1293, 2
        %v1482 = vrot.slane %v1294, 2
        %v1483 = vsel %vm554, %v1481, %v1482
        %v1484 = vrot.slane %v1295, 2
        %v1485 = vrot.slane %v1296, 2
        %v1486 = vsel %vm554, %v1484, %v1485
        %v1487 = vrot.slane %v1297, 2
        %v1488 = vrot.slane %v1298, 2
        %v1489 = vsel %vm554, %v1487, %v1488
        %s1498 = scalar_lea.vmem [#allocation8], 256
        %v1499 = vld [vmem:[%s1498] sm:$0xff]
        %v1500 = vld [vmem:[%s1498 + $0x8] sm:$0xff]
        %v1501 = vld [vmem:[%s1498 + $0x10] sm:$0xff]
        %v1502 = vld [vmem:[%s1498 + $0x18] sm:$0xff]
        %v1503 = vld [vmem:[%s1498 + $0x20] sm:$0xff]
        %v1504 = vld [vmem:[%s1498 + $0x28] sm:$0xff]
        %v1505 = vld [vmem:[%s1498 + $0x30] sm:$0xff]
        %v1506 = vld [vmem:[%s1498 + $0x38] sm:$0xff]
        %v1507 = vld [vmem:[%s1498 + $0x40] sm:$0xff]
        %v1508 = vld [vmem:[%s1498 + $0x48] sm:$0xff]
        %v1509 = vld [vmem:[%s1498 + $0x50] sm:$0xff]
        %v1510 = vld [vmem:[%s1498 + $0x58] sm:$0xff]
        %v1511 = vld [vmem:[%s1498 + $0x60] sm:$0xff]
        %v1512 = vld [vmem:[%s1498 + $0x68] sm:$0xff]
        %v1513 = vld [vmem:[%s1498 + $0x70] sm:$0xff]
        %v1514 = vld [vmem:[%s1498 + $0x78] sm:$0xff]
        %1515 = vmatpush.msra.mxu0 %v1514
        %1516 = vmatpush.msra.mxu0 %v1513
        %1517 = vmatpush.msra.mxu0 %v1512
        %1518 = vmatpush.msra.mxu0 %v1511
        %1519 = vmatpush.msra.mxu0 %v1510
        %1520 = vmatpush.msra.mxu0 %v1509
        %1521 = vmatpush.msra.mxu0 %v1508
        %1522 = vmatpush.msra.mxu0 %v1507
        %1523 = vmatpush.msra.mxu0 %v1506
        %1524 = vmatpush.msra.mxu0 %v1505
        %1525 = vmatpush.msra.mxu0 %v1504
        %1526 = vmatpush.msra.mxu0 %v1503
        %1527 = vmatpush.msra.mxu0 %v1502
        %1528 = vmatpush.msra.mxu0 %v1501
        %1529 = vmatpush.msra.mxu0 %v1500
        %1530 = vmatpush.msra.mxu0 %v1499
        %1531 = vmatmul.f32.gmra.mxu0 %v1468
        %v1532 = vpop.f32.mrf.mxu0
        %v1533 = vadd.f32 0.0, %v1532
        %1534 = vmatmul.f32.gmra.mxu0 %v1471
        %v1535 = vpop.f32.mrf.mxu0
        %v1536 = vadd.f32 0.0, %v1535
        %1537 = vmatmul.f32.gmra.mxu0 %v1474
        %v1538 = vpop.f32.mrf.mxu0
        %v1539 = vadd.f32 0.0, %v1538
        %1540 = vmatmul.f32.gmra.mxu0 %v1477
        %v1541 = vpop.f32.mrf.mxu0
        %v1542 = vadd.f32 0.0, %v1541
        %1543 = vmatmul.f32.gmra.mxu0 %v1480
        %v1544 = vpop.f32.mrf.mxu0
        %v1545 = vadd.f32 0.0, %v1544
        %1546 = vmatmul.f32.gmra.mxu0 %v1483
        %v1547 = vpop.f32.mrf.mxu0
        %v1548 = vadd.f32 0.0, %v1547
        %1549 = vmatmul.f32.gmra.mxu0 %v1486
        %v1550 = vpop.f32.mrf.mxu0
        %v1551 = vadd.f32 0.0, %v1550
        %1552 = vmatmul.f32.gmra.mxu0 %v1489
        %v1553 = vpop.f32.mrf.mxu0
        %v1554 = vadd.f32 0.0, %v1553
        %1555 = vdwg.mxu0
        %v1556 = vadd.f32 %v1443, %v1533
        %v1557 = vadd.f32 %v1446, %v1536
        %v1558 = vadd.f32 %v1449, %v1539
        %v1559 = vadd.f32 %v1452, %v1542
        %v1560 = vadd.f32 %v1455, %v1545
        %v1561 = vadd.f32 %v1458, %v1548
        %v1562 = vadd.f32 %v1461, %v1551
        %v1563 = vadd.f32 %v1464, %v1554
        %s1564 = scalar_lea.vmem [#allocation8], 384
        %v1565 = vld [vmem:[%s1564] sm:$0xff]
        %v1566 = vld [vmem:[%s1564 + $0x8] sm:$0xff]
        %v1567 = vld [vmem:[%s1564 + $0x10] sm:$0xff]
        %v1568 = vld [vmem:[%s1564 + $0x18] sm:$0xff]
        %v1569 = vld [vmem:[%s1564 + $0x20] sm:$0xff]
        %v1570 = vld [vmem:[%s1564 + $0x28] sm:$0xff]
        %v1571 = vld [vmem:[%s1564 + $0x30] sm:$0xff]
        %v1572 = vld [vmem:[%s1564 + $0x38] sm:$0xff]
        %v1573 = vld [vmem:[%s1564 + $0x40] sm:$0xff]
        %v1574 = vld [vmem:[%s1564 + $0x48] sm:$0xff]
        %v1575 = vld [vmem:[%s1564 + $0x50] sm:$0xff]
        %v1576 = vld [vmem:[%s1564 + $0x58] sm:$0xff]
        %v1577 = vld [vmem:[%s1564 + $0x60] sm:$0xff]
        %v1578 = vld [vmem:[%s1564 + $0x68] sm:$0xff]
        %v1579 = vld [vmem:[%s1564 + $0x70] sm:$0xff]
        %v1580 = vld [vmem:[%s1564 + $0x78] sm:$0xff]
        %1581 = vmatpush.msra.mxu0 %v1580
        %1582 = vmatpush.msra.mxu0 %v1579
        %1583 = vmatpush.msra.mxu0 %v1578
        %1584 = vmatpush.msra.mxu0 %v1577
        %1585 = vmatpush.msra.mxu0 %v1576
        %1586 = vmatpush.msra.mxu0 %v1575
        %1587 = vmatpush.msra.mxu0 %v1574
        %1588 = vmatpush.msra.mxu0 %v1573
        %1589 = vmatpush.msra.mxu0 %v1572
        %1590 = vmatpush.msra.mxu0 %v1571
        %1591 = vmatpush.msra.mxu0 %v1570
        %1592 = vmatpush.msra.mxu0 %v1569
        %1593 = vmatpush.msra.mxu0 %v1568
        %1594 = vmatpush.msra.mxu0 %v1567
        %1595 = vmatpush.msra.mxu0 %v1566
        %1596 = vmatpush.msra.mxu0 %v1565
        %1597 = vmatmul.f32.gmra.mxu0 %v1285
        %v1598 = vpop.f32.mrf.mxu0
        %v1599 = vadd.f32 0.0, %v1598
        %1600 = vmatmul.f32.gmra.mxu0 %v1287
        %v1601 = vpop.f32.mrf.mxu0
        %v1602 = vadd.f32 0.0, %v1601
        %1603 = vmatmul.f32.gmra.mxu0 %v1289
        %v1604 = vpop.f32.mrf.mxu0
        %v1605 = vadd.f32 0.0, %v1604
        %1606 = vmatmul.f32.gmra.mxu0 %v1291
        %v1607 = vpop.f32.mrf.mxu0
        %v1608 = vadd.f32 0.0, %v1607
        %1609 = vmatmul.f32.gmra.mxu0 %v1293
        %v1610 = vpop.f32.mrf.mxu0
        %v1611 = vadd.f32 0.0, %v1610
        %1612 = vmatmul.f32.gmra.mxu0 %v1295
        %v1613 = vpop.f32.mrf.mxu0
        %v1614 = vadd.f32 0.0, %v1613
        %1615 = vmatmul.f32.gmra.mxu0 %v1297
        %v1616 = vpop.f32.mrf.mxu0
        %v1617 = vadd.f32 0.0, %v1616
        %1618 = vmatmul.f32.gmra.mxu0 %v1299
        %v1619 = vpop.f32.mrf.mxu0
        %v1620 = vadd.f32 0.0, %v1619
        %1621 = vdwg.mxu0
        %v1622 = vadd.f32 %v1556, %v1599
        %v1623 = vadd.f32 %v1557, %v1602
        %v1624 = vadd.f32 %v1558, %v1605
        %v1625 = vadd.f32 %v1559, %v1608
        %v1626 = vadd.f32 %v1560, %v1611
        %v1627 = vadd.f32 %v1561, %v1614
        %v1628 = vadd.f32 %v1562, %v1617
        %v1629 = vadd.f32 %v1563, %v1620
        %v1632 = vrot.slane %v1299, 1
        %v1633 = vrot.slane %v1300, 1
        %v1634 = vsel %vm422, %v1632, %v1633
        %s1636 = scalar_lea.vmem [#allocation8], 512
        %v1637 = vld [vmem:[%s1636] sm:$0xff]
        %v1638 = vld [vmem:[%s1636 + $0x8] sm:$0xff]
        %v1639 = vld [vmem:[%s1636 + $0x10] sm:$0xff]
        %v1640 = vld [vmem:[%s1636 + $0x18] sm:$0xff]
        %v1641 = vld [vmem:[%s1636 + $0x20] sm:$0xff]
        %v1642 = vld [vmem:[%s1636 + $0x28] sm:$0xff]
        %v1643 = vld [vmem:[%s1636 + $0x30] sm:$0xff]
        %v1644 = vld [vmem:[%s1636 + $0x38] sm:$0xff]
        %v1645 = vld [vmem:[%s1636 + $0x40] sm:$0xff]
        %v1646 = vld [vmem:[%s1636 + $0x48] sm:$0xff]
        %v1647 = vld [vmem:[%s1636 + $0x50] sm:$0xff]
        %v1648 = vld [vmem:[%s1636 + $0x58] sm:$0xff]
        %v1649 = vld [vmem:[%s1636 + $0x60] sm:$0xff]
        %v1650 = vld [vmem:[%s1636 + $0x68] sm:$0xff]
        %v1651 = vld [vmem:[%s1636 + $0x70] sm:$0xff]
        %v1652 = vld [vmem:[%s1636 + $0x78] sm:$0xff]
        %1653 = vmatpush.msra.mxu0 %v1652
        %1654 = vmatpush.msra.mxu0 %v1651
        %1655 = vmatpush.msra.mxu0 %v1650
        %1656 = vmatpush.msra.mxu0 %v1649
        %1657 = vmatpush.msra.mxu0 %v1648
        %1658 = vmatpush.msra.mxu0 %v1647
        %1659 = vmatpush.msra.mxu0 %v1646
        %1660 = vmatpush.msra.mxu0 %v1645
        %1661 = vmatpush.msra.mxu0 %v1644
        %1662 = vmatpush.msra.mxu0 %v1643
        %1663 = vmatpush.msra.mxu0 %v1642
        %1664 = vmatpush.msra.mxu0 %v1641
        %1665 = vmatpush.msra.mxu0 %v1640
        %1666 = vmatpush.msra.mxu0 %v1639
        %1667 = vmatpush.msra.mxu0 %v1638
        %1668 = vmatpush.msra.mxu0 %v1637
        %1669 = vmatmul.f32.gmra.mxu0 %v1340
        %v1670 = vpop.f32.mrf.mxu0
        %v1671 = vadd.f32 0.0, %v1670
        %1672 = vmatmul.f32.gmra.mxu0 %v1343
        %v1673 = vpop.f32.mrf.mxu0
        %v1674 = vadd.f32 0.0, %v1673
        %1675 = vmatmul.f32.gmra.mxu0 %v1346
        %v1676 = vpop.f32.mrf.mxu0
        %v1677 = vadd.f32 0.0, %v1676
        %1678 = vmatmul.f32.gmra.mxu0 %v1349
        %v1679 = vpop.f32.mrf.mxu0
        %v1680 = vadd.f32 0.0, %v1679
        %1681 = vmatmul.f32.gmra.mxu0 %v1352
        %v1682 = vpop.f32.mrf.mxu0
        %v1683 = vadd.f32 0.0, %v1682
        %1684 = vmatmul.f32.gmra.mxu0 %v1355
        %v1685 = vpop.f32.mrf.mxu0
        %v1686 = vadd.f32 0.0, %v1685
        %1687 = vmatmul.f32.gmra.mxu0 %v1358
        %v1688 = vpop.f32.mrf.mxu0
        %v1689 = vadd.f32 0.0, %v1688
        %1690 = vmatmul.f32.gmra.mxu0 %v1634
        %v1691 = vpop.f32.mrf.mxu0
        %v1692 = vadd.f32 0.0, %v1691
        %1693 = vdwg.mxu0
        %v1694 = vadd.f32 %v1622, %v1671
        %v1695 = vadd.f32 %v1623, %v1674
        %v1696 = vadd.f32 %v1624, %v1677
        %v1697 = vadd.f32 %v1625, %v1680
        %v1698 = vadd.f32 %v1626, %v1683
        %v1699 = vadd.f32 %v1627, %v1686
        %v1700 = vadd.f32 %v1628, %v1689
        %v1701 = vadd.f32 %v1629, %v1692
        %v1702 = vrot.slane %v1299, 2
        %v1703 = vrot.slane %v1300, 2
        %v1704 = vsel %vm554, %v1702, %v1703
        %s1706 = scalar_lea.vmem [#allocation8], 640
        %v1707 = vld [vmem:[%s1706] sm:$0xff]
        %v1708 = vld [vmem:[%s1706 + $0x8] sm:$0xff]
        %v1709 = vld [vmem:[%s1706 + $0x10] sm:$0xff]
        %v1710 = vld [vmem:[%s1706 + $0x18] sm:$0xff]
        %v1711 = vld [vmem:[%s1706 + $0x20] sm:$0xff]
        %v1712 = vld [vmem:[%s1706 + $0x28] sm:$0xff]
        %v1713 = vld [vmem:[%s1706 + $0x30] sm:$0xff]
        %v1714 = vld [vmem:[%s1706 + $0x38] sm:$0xff]
        %v1715 = vld [vmem:[%s1706 + $0x40] sm:$0xff]
        %v1716 = vld [vmem:[%s1706 + $0x48] sm:$0xff]
        %v1717 = vld [vmem:[%s1706 + $0x50] sm:$0xff]
        %v1718 = vld [vmem:[%s1706 + $0x58] sm:$0xff]
        %v1719 = vld [vmem:[%s1706 + $0x60] sm:$0xff]
        %v1720 = vld [vmem:[%s1706 + $0x68] sm:$0xff]
        %v1721 = vld [vmem:[%s1706 + $0x70] sm:$0xff]
        %v1722 = vld [vmem:[%s1706 + $0x78] sm:$0xff]
        %1723 = vmatpush.msra.mxu0 %v1722
        %1724 = vmatpush.msra.mxu0 %v1721
        %1725 = vmatpush.msra.mxu0 %v1720
        %1726 = vmatpush.msra.mxu0 %v1719
        %1727 = vmatpush.msra.mxu0 %v1718
        %1728 = vmatpush.msra.mxu0 %v1717
        %1729 = vmatpush.msra.mxu0 %v1716
        %1730 = vmatpush.msra.mxu0 %v1715
        %1731 = vmatpush.msra.mxu0 %v1714
        %1732 = vmatpush.msra.mxu0 %v1713
        %1733 = vmatpush.msra.mxu0 %v1712
        %1734 = vmatpush.msra.mxu0 %v1711
        %1735 = vmatpush.msra.mxu0 %v1710
        %1736 = vmatpush.msra.mxu0 %v1709
        %1737 = vmatpush.msra.mxu0 %v1708
        %1738 = vmatpush.msra.mxu0 %v1707
        %1739 = vmatmul.f32.gmra.mxu0 %v1471
        %v1740 = vpop.f32.mrf.mxu0
        %v1741 = vadd.f32 0.0, %v1740
        %1742 = vmatmul.f32.gmra.mxu0 %v1474
        %v1743 = vpop.f32.mrf.mxu0
        %v1744 = vadd.f32 0.0, %v1743
        %1745 = vmatmul.f32.gmra.mxu0 %v1477
        %v1746 = vpop.f32.mrf.mxu0
        %v1747 = vadd.f32 0.0, %v1746
        %1748 = vmatmul.f32.gmra.mxu0 %v1480
        %v1749 = vpop.f32.mrf.mxu0
        %v1750 = vadd.f32 0.0, %v1749
        %1751 = vmatmul.f32.gmra.mxu0 %v1483
        %v1752 = vpop.f32.mrf.mxu0
        %v1753 = vadd.f32 0.0, %v1752
        %1754 = vmatmul.f32.gmra.mxu0 %v1486
        %v1755 = vpop.f32.mrf.mxu0
        %v1756 = vadd.f32 0.0, %v1755
        %1757 = vmatmul.f32.gmra.mxu0 %v1489
        %v1758 = vpop.f32.mrf.mxu0
        %v1759 = vadd.f32 0.0, %v1758
        %1760 = vmatmul.f32.gmra.mxu0 %v1704
        %v1761 = vpop.f32.mrf.mxu0
        %v1762 = vadd.f32 0.0, %v1761
        %1763 = vdwg.mxu0
        %v1764 = vadd.f32 %v1694, %v1741
        %v1765 = vadd.f32 %v1695, %v1744
        %v1766 = vadd.f32 %v1696, %v1747
        %v1767 = vadd.f32 %v1697, %v1750
        %v1768 = vadd.f32 %v1698, %v1753
        %v1769 = vadd.f32 %v1699, %v1756
        %v1770 = vadd.f32 %v1700, %v1759
        %v1771 = vadd.f32 %v1701, %v1762
        %s1772 = scalar_lea.vmem [#allocation8], 768
        %v1773 = vld [vmem:[%s1772] sm:$0xff]
        %v1774 = vld [vmem:[%s1772 + $0x8] sm:$0xff]
        %v1775 = vld [vmem:[%s1772 + $0x10] sm:$0xff]
        %v1776 = vld [vmem:[%s1772 + $0x18] sm:$0xff]
        %v1777 = vld [vmem:[%s1772 + $0x20] sm:$0xff]
        %v1778 = vld [vmem:[%s1772 + $0x28] sm:$0xff]
        %v1779 = vld [vmem:[%s1772 + $0x30] sm:$0xff]
        %v1780 = vld [vmem:[%s1772 + $0x38] sm:$0xff]
        %v1781 = vld [vmem:[%s1772 + $0x40] sm:$0xff]
        %v1782 = vld [vmem:[%s1772 + $0x48] sm:$0xff]
        %v1783 = vld [vmem:[%s1772 + $0x50] sm:$0xff]
        %v1784 = vld [vmem:[%s1772 + $0x58] sm:$0xff]
        %v1785 = vld [vmem:[%s1772 + $0x60] sm:$0xff]
        %v1786 = vld [vmem:[%s1772 + $0x68] sm:$0xff]
        %v1787 = vld [vmem:[%s1772 + $0x70] sm:$0xff]
        %v1788 = vld [vmem:[%s1772 + $0x78] sm:$0xff]
        %1789 = vmatpush.msra.mxu0 %v1788
        %1790 = vmatpush.msra.mxu0 %v1787
        %1791 = vmatpush.msra.mxu0 %v1786
        %1792 = vmatpush.msra.mxu0 %v1785
        %1793 = vmatpush.msra.mxu0 %v1784
        %1794 = vmatpush.msra.mxu0 %v1783
        %1795 = vmatpush.msra.mxu0 %v1782
        %1796 = vmatpush.msra.mxu0 %v1781
        %1797 = vmatpush.msra.mxu0 %v1780
        %1798 = vmatpush.msra.mxu0 %v1779
        %1799 = vmatpush.msra.mxu0 %v1778
        %1800 = vmatpush.msra.mxu0 %v1777
        %1801 = vmatpush.msra.mxu0 %v1776
        %1802 = vmatpush.msra.mxu0 %v1775
        %1803 = vmatpush.msra.mxu0 %v1774
        %1804 = vmatpush.msra.mxu0 %v1773
        %1805 = vmatmul.f32.gmra.mxu0 %v1287
        %v1806 = vpop.f32.mrf.mxu0
        %v1807 = vadd.f32 0.0, %v1806
        %1808 = vmatmul.f32.gmra.mxu0 %v1289
        %v1809 = vpop.f32.mrf.mxu0
        %v1810 = vadd.f32 0.0, %v1809
        %1811 = vmatmul.f32.gmra.mxu0 %v1291
        %v1812 = vpop.f32.mrf.mxu0
        %v1813 = vadd.f32 0.0, %v1812
        %1814 = vmatmul.f32.gmra.mxu0 %v1293
        %v1815 = vpop.f32.mrf.mxu0
        %v1816 = vadd.f32 0.0, %v1815
        %1817 = vmatmul.f32.gmra.mxu0 %v1295
        %v1818 = vpop.f32.mrf.mxu0
        %v1819 = vadd.f32 0.0, %v1818
        %1820 = vmatmul.f32.gmra.mxu0 %v1297
        %v1821 = vpop.f32.mrf.mxu0
        %v1822 = vadd.f32 0.0, %v1821
        %1823 = vmatmul.f32.gmra.mxu0 %v1299
        %v1824 = vpop.f32.mrf.mxu0
        %v1825 = vadd.f32 0.0, %v1824
        %1826 = vmatmul.f32.gmra.mxu0 %v1301
        %v1827 = vpop.f32.mrf.mxu0
        %v1828 = vadd.f32 0.0, %v1827
        %1829 = vdwg.mxu0
        %v1830 = vadd.f32 %v1764, %v1807
        %v1831 = vadd.f32 %v1765, %v1810
        %v1832 = vadd.f32 %v1766, %v1813
        %v1833 = vadd.f32 %v1767, %v1816
        %v1834 = vadd.f32 %v1768, %v1819
        %v1835 = vadd.f32 %v1769, %v1822
        %v1836 = vadd.f32 %v1770, %v1825
        %v1837 = vadd.f32 %v1771, %v1828
        %v1840 = vrot.slane %v1301, 1
        %v1841 = vrot.slane %v1302, 1
        %v1842 = vsel %vm422, %v1840, %v1841
        %s1844 = scalar_lea.vmem [#allocation8], 896
        %v1845 = vld [vmem:[%s1844] sm:$0xff]
        %v1846 = vld [vmem:[%s1844 + $0x8] sm:$0xff]
        %v1847 = vld [vmem:[%s1844 + $0x10] sm:$0xff]
        %v1848 = vld [vmem:[%s1844 + $0x18] sm:$0xff]
        %v1849 = vld [vmem:[%s1844 + $0x20] sm:$0xff]
        %v1850 = vld [vmem:[%s1844 + $0x28] sm:$0xff]
        %v1851 = vld [vmem:[%s1844 + $0x30] sm:$0xff]
        %v1852 = vld [vmem:[%s1844 + $0x38] sm:$0xff]
        %v1853 = vld [vmem:[%s1844 + $0x40] sm:$0xff]
        %v1854 = vld [vmem:[%s1844 + $0x48] sm:$0xff]
        %v1855 = vld [vmem:[%s1844 + $0x50] sm:$0xff]
        %v1856 = vld [vmem:[%s1844 + $0x58] sm:$0xff]
        %v1857 = vld [vmem:[%s1844 + $0x60] sm:$0xff]
        %v1858 = vld [vmem:[%s1844 + $0x68] sm:$0xff]
        %v1859 = vld [vmem:[%s1844 + $0x70] sm:$0xff]
        %v1860 = vld [vmem:[%s1844 + $0x78] sm:$0xff]
        %1861 = vmatpush.msra.mxu0 %v1860
        %1862 = vmatpush.msra.mxu0 %v1859
        %1863 = vmatpush.msra.mxu0 %v1858
        %1864 = vmatpush.msra.mxu0 %v1857
        %1865 = vmatpush.msra.mxu0 %v1856
        %1866 = vmatpush.msra.mxu0 %v1855
        %1867 = vmatpush.msra.mxu0 %v1854
        %1868 = vmatpush.msra.mxu0 %v1853
        %1869 = vmatpush.msra.mxu0 %v1852
        %1870 = vmatpush.msra.mxu0 %v1851
        %1871 = vmatpush.msra.mxu0 %v1850
        %1872 = vmatpush.msra.mxu0 %v1849
        %1873 = vmatpush.msra.mxu0 %v1848
        %1874 = vmatpush.msra.mxu0 %v1847
        %1875 = vmatpush.msra.mxu0 %v1846
        %1876 = vmatpush.msra.mxu0 %v1845
        %1877 = vmatmul.f32.gmra.mxu0 %v1343
        %v1878 = vpop.f32.mrf.mxu0
        %v1879 = vadd.f32 0.0, %v1878
        %1880 = vmatmul.f32.gmra.mxu0 %v1346
        %v1881 = vpop.f32.mrf.mxu0
        %v1882 = vadd.f32 0.0, %v1881
        %1883 = vmatmul.f32.gmra.mxu0 %v1349
        %v1884 = vpop.f32.mrf.mxu0
        %v1885 = vadd.f32 0.0, %v1884
        %1886 = vmatmul.f32.gmra.mxu0 %v1352
        %v1887 = vpop.f32.mrf.mxu0
        %v1888 = vadd.f32 0.0, %v1887
        %1889 = vmatmul.f32.gmra.mxu0 %v1355
        %v1890 = vpop.f32.mrf.mxu0
        %v1891 = vadd.f32 0.0, %v1890
        %1892 = vmatmul.f32.gmra.mxu0 %v1358
        %v1893 = vpop.f32.mrf.mxu0
        %v1894 = vadd.f32 0.0, %v1893
        %1895 = vmatmul.f32.gmra.mxu0 %v1634
        %v1896 = vpop.f32.mrf.mxu0
        %v1897 = vadd.f32 0.0, %v1896
        %1898 = vmatmul.f32.gmra.mxu0 %v1842
        %v1899 = vpop.f32.mrf.mxu0
        %v1900 = vadd.f32 0.0, %v1899
        %1901 = vdwg.mxu0
        %v1902 = vadd.f32 %v1830, %v1879
        %v1903 = vadd.f32 %v1831, %v1882
        %v1904 = vadd.f32 %v1832, %v1885
        %v1905 = vadd.f32 %v1833, %v1888
        %v1906 = vadd.f32 %v1834, %v1891
        %v1907 = vadd.f32 %v1835, %v1894
        %v1908 = vadd.f32 %v1836, %v1897
        %v1909 = vadd.f32 %v1837, %v1900
        %v1910 = vrot.slane %v1301, 2
        %v1911 = vrot.slane %v1302, 2
        %v1912 = vsel %vm554, %v1910, %v1911
        %s1914 = scalar_lea.vmem [#allocation8], 1024
        %v1915 = vld [vmem:[%s1914] sm:$0xff]
        %v1916 = vld [vmem:[%s1914 + $0x8] sm:$0xff]
        %v1917 = vld [vmem:[%s1914 + $0x10] sm:$0xff]
        %v1918 = vld [vmem:[%s1914 + $0x18] sm:$0xff]
        %v1919 = vld [vmem:[%s1914 + $0x20] sm:$0xff]
        %v1920 = vld [vmem:[%s1914 + $0x28] sm:$0xff]
        %v1921 = vld [vmem:[%s1914 + $0x30] sm:$0xff]
        %v1922 = vld [vmem:[%s1914 + $0x38] sm:$0xff]
        %v1923 = vld [vmem:[%s1914 + $0x40] sm:$0xff]
        %v1924 = vld [vmem:[%s1914 + $0x48] sm:$0xff]
        %v1925 = vld [vmem:[%s1914 + $0x50] sm:$0xff]
        %v1926 = vld [vmem:[%s1914 + $0x58] sm:$0xff]
        %v1927 = vld [vmem:[%s1914 + $0x60] sm:$0xff]
        %v1928 = vld [vmem:[%s1914 + $0x68] sm:$0xff]
        %v1929 = vld [vmem:[%s1914 + $0x70] sm:$0xff]
        %v1930 = vld [vmem:[%s1914 + $0x78] sm:$0xff]
        %1931 = vmatpush.msra.mxu0 %v1930
        %1932 = vmatpush.msra.mxu0 %v1929
        %1933 = vmatpush.msra.mxu0 %v1928
        %1934 = vmatpush.msra.mxu0 %v1927
        %1935 = vmatpush.msra.mxu0 %v1926
        %1936 = vmatpush.msra.mxu0 %v1925
        %1937 = vmatpush.msra.mxu0 %v1924
        %1938 = vmatpush.msra.mxu0 %v1923
        %1939 = vmatpush.msra.mxu0 %v1922
        %1940 = vmatpush.msra.mxu0 %v1921
        %1941 = vmatpush.msra.mxu0 %v1920
        %1942 = vmatpush.msra.mxu0 %v1919
        %1943 = vmatpush.msra.mxu0 %v1918
        %1944 = vmatpush.msra.mxu0 %v1917
        %1945 = vmatpush.msra.mxu0 %v1916
        %1946 = vmatpush.msra.mxu0 %v1915
        %1947 = vmatmul.f32.gmra.mxu0 %v1474
        %v1948 = vpop.f32.mrf.mxu0
        %v1949 = vadd.f32 0.0, %v1948
        %1950 = vmatmul.f32.gmra.mxu0 %v1477
        %v1951 = vpop.f32.mrf.mxu0
        %v1952 = vadd.f32 0.0, %v1951
        %1953 = vmatmul.f32.gmra.mxu0 %v1480
        %v1954 = vpop.f32.mrf.mxu0
        %v1955 = vadd.f32 0.0, %v1954
        %1956 = vmatmul.f32.gmra.mxu0 %v1483
        %v1957 = vpop.f32.mrf.mxu0
        %v1958 = vadd.f32 0.0, %v1957
        %1959 = vmatmul.f32.gmra.mxu0 %v1486
        %v1960 = vpop.f32.mrf.mxu0
        %v1961 = vadd.f32 0.0, %v1960
        %1962 = vmatmul.f32.gmra.mxu0 %v1489
        %v1963 = vpop.f32.mrf.mxu0
        %v1964 = vadd.f32 0.0, %v1963
        %1965 = vmatmul.f32.gmra.mxu0 %v1704
        %v1966 = vpop.f32.mrf.mxu0
        %v1967 = vadd.f32 0.0, %v1966
        %1968 = vmatmul.f32.gmra.mxu0 %v1912
        %v1969 = vpop.f32.mrf.mxu0
        %v1970 = vadd.f32 0.0, %v1969
        %1971 = vdwg.mxu0
        %v1972 = vadd.f32 %v1902, %v1949
        %v1973 = vadd.f32 %v1903, %v1952
        %v1974 = vadd.f32 %v1904, %v1955
        %v1975 = vadd.f32 %v1905, %v1958
        %v1976 = vadd.f32 %v1906, %v1961
        %v1977 = vadd.f32 %v1907, %v1964
        %v1978 = vadd.f32 %v1908, %v1967
        %v1979 = vadd.f32 %v1909, %v1970
        %v1980 = vadd.f32 %v1972, %v1973
        %v1981 = vadd.f32 %v1980, %v1974
        %v1982 = vadd.f32 %v1981, %v1975
        %v1983 = vadd.f32 %v1982, %v1976
        %v1984 = vadd.f32 %v1983, %v1977
        %v1985 = vadd.f32 %v1984, %v1978
        %v1986 = vadd.f32 %v1985, %v1979
        %v1987 = vrot.slane %v1986, 4
        %v1988 = vadd.f32 %v1986, %v1987
        %v1989 = vrot.slane %v1988, 2
        %v1990 = vadd.f32 %v1988, %v1989
        %v1991 = vrot.slane %v1990, 1
        %v1992 = vadd.f32 %v1990, %v1991
        %v1993 = vmul.f32 %v1972, %v1972
        %v1994 = vmul.f32 %v1973, %v1973
        %v1995 = vmul.f32 %v1974, %v1974
        %v1996 = vmul.f32 %v1975, %v1975
        %v1997 = vmul.f32 %v1976, %v1976
        %v1998 = vmul.f32 %v1977, %v1977
        %v1999 = vmul.f32 %v1978, %v1978
        %v2000 = vmul.f32 %v1979, %v1979
        %v2001 = vadd.f32 %v1993, %v1994
        %v2002 = vadd.f32 %v2001, %v1995
        %v2003 = vadd.f32 %v2002, %v1996
        %v2004 = vadd.f32 %v2003, %v1997
        %v2005 = vadd.f32 %v2004, %v1998
        %v2006 = vadd.f32 %v2005, %v1999
        %v2007 = vadd.f32 %v2006, %v2000
        %v2008 = vrot.slane %v2007, 4
        %v2009 = vadd.f32 %v2007, %v2008
        %v2010 = vrot.slane %v2009, 2
        %v2011 = vadd.f32 %v2009, %v2010
        %v2012 = vrot.slane %v2011, 1
        %v2013 = vadd.f32 %v2011, %v2012
        %2015 = vrot.lane.b32.xlu0 %v1992, 112
        %v2016 = vpop.permute.xlu0 %2015
        %v2018 = vadd.f32 %v1992, %v2016
        %2019 = vrot.lane.b32.xlu0 %v1992, 96
        %v2020 = vpop.permute.xlu0 %2019
        %v2022 = vadd.f32 %v2018, %v2020
        %2023 = vrot.lane.b32.xlu0 %v1992, 80
        %v2024 = vpop.permute.xlu0 %2023
        %v2026 = vadd.f32 %v2022, %v2024
        %2027 = vrot.lane.b32.xlu0 %v1992, 64
        %v2028 = vpop.permute.xlu0 %2027
        %v2030 = vadd.f32 %v2026, %v2028
        %2031 = vrot.lane.b32.xlu0 %v1992, 48
        %v2032 = vpop.permute.xlu0 %2031
        %v2034 = vadd.f32 %v2030, %v2032
        %2035 = vrot.lane.b32.xlu0 %v1992, 32
        %v2036 = vpop.permute.xlu0 %2035
        %v2038 = vadd.f32 %v2034, %v2036
        %2039 = vrot.lane.b32.xlu0 %v1992, 16
        %v2040 = vpop.permute.xlu0 %2039
        %v2042 = vadd.f32 %v2038, %v2040
        %v2043 = vmul.f32 %v2042, 0.001953125
        %2045 = vrot.lane.b32.xlu0 %v2013, 112
        %v2046 = vpop.permute.xlu0 %2045
        %v2048 = vadd.f32 %v2013, %v2046
        %2049 = vrot.lane.b32.xlu0 %v2013, 96
        %v2050 = vpop.permute.xlu0 %2049
        %v2052 = vadd.f32 %v2048, %v2050
        %2053 = vrot.lane.b32.xlu0 %v2013, 80
        %v2054 = vpop.permute.xlu0 %2053
        %v2056 = vadd.f32 %v2052, %v2054
        %2057 = vrot.lane.b32.xlu0 %v2013, 64
        %v2058 = vpop.permute.xlu0 %2057
        %v2060 = vadd.f32 %v2056, %v2058
        %2061 = vrot.lane.b32.xlu0 %v2013, 48
        %v2062 = vpop.permute.xlu0 %2061
        %v2064 = vadd.f32 %v2060, %v2062
        %2065 = vrot.lane.b32.xlu0 %v2013, 32
        %v2066 = vpop.permute.xlu0 %2065
        %v2068 = vadd.f32 %v2064, %v2066
        %2069 = vrot.lane.b32.xlu0 %v2013, 16
        %v2070 = vpop.permute.xlu0 %2069
        %v2072 = vadd.f32 %v2068, %v2070
        %v2073 = vmul.f32 %v2072, 0.001953125
        %v2074 = vmul.f32 %v2043, %v2043
        %v2075 = vsub.f32 %v2073, %v2074
        %v2076 = vadd.f32 %v2075, 1e-05
        %v2077 = vrsqrt.pop %v2076
        %v2078 = vmul.f32 %v2077, %v2076
        %v2079 = vmul.f32 %v2078, %v2077
        %v2080 = vmul.f32 0.5, %v2079
        %v2081 = vsub.f32 1.5, %v2080
        %v2082 = vmul.f32 %v2077, %v2081
        %vm2083 = vweird.f32 %v2076
        %vm2084 = vweird.f32 %v2077
        %vm2085 = vmor %vm2083, %vm2084
        %v2086 = vsel %vm2085, %v2077, %v2082
        %2088 = vrot.lane.b32.xlu0 %v2086, 16
        %v2089 = vpop.permute.xlu0 %2088
        %2091 = vrot.lane.b32.xlu0 %v2086, 32
        %v2092 = vpop.permute.xlu0 %2091
        %2094 = vrot.lane.b32.xlu0 %v2086, 48
        %v2095 = vpop.permute.xlu0 %2094
        %2097 = vrot.lane.b32.xlu0 %v2086, 64
        %v2098 = vpop.permute.xlu0 %2097
        %2100 = vrot.lane.b32.xlu0 %v2086, 80
        %v2101 = vpop.permute.xlu0 %2100
        %2103 = vrot.lane.b32.xlu0 %v2086, 96
        %v2104 = vpop.permute.xlu0 %2103
        %2106 = vrot.lane.b32.xlu0 %v2086, 112
        %v2107 = vpop.permute.xlu0 %2106
        %v2109 = vsel %vm1198, %v2086, %v2089
        %v2110 = vsel %vm1200, %v2109, %v2092
        %v2111 = vsel %vm1202, %v2110, %v2095
        %v2112 = vsel %vm1204, %v2111, %v2098
        %v2113 = vsel %vm1206, %v2112, %v2101
        %v2114 = vsel %vm1208, %v2113, %v2104
        %v2115 = vsel %vm1210, %v2114, %v2107
        %v2116 = vld [vmem:[%s5] sm:$0x1]
        %v2117 = vmul.f32 %v2115, %v2116
        %v2118 = vld [vmem:[%s6] sm:$0x1]
        %v2119 = vmul.f32 %v2043, %v2086
        %2121 = vrot.lane.b32.xlu0 %v2119, 16
        %v2122 = vpop.permute.xlu0 %2121
        %2124 = vrot.lane.b32.xlu0 %v2119, 32
        %v2125 = vpop.permute.xlu0 %2124
        %2127 = vrot.lane.b32.xlu0 %v2119, 48
        %v2128 = vpop.permute.xlu0 %2127
        %2130 = vrot.lane.b32.xlu0 %v2119, 64
        %v2131 = vpop.permute.xlu0 %2130
        %2133 = vrot.lane.b32.xlu0 %v2119, 80
        %v2134 = vpop.permute.xlu0 %2133
        %2136 = vrot.lane.b32.xlu0 %v2119, 96
        %v2137 = vpop.permute.xlu0 %2136
        %2139 = vrot.lane.b32.xlu0 %v2119, 112
        %v2140 = vpop.permute.xlu0 %2139
        %v2142 = vsel %vm1198, %v2119, %v2122
        %v2143 = vsel %vm1200, %v2142, %v2125
        %v2144 = vsel %vm1202, %v2143, %v2128
        %v2145 = vsel %vm1204, %v2144, %v2131
        %v2146 = vsel %vm1206, %v2145, %v2134
        %v2147 = vsel %vm1208, %v2146, %v2137
        %v2148 = vsel %vm1210, %v2147, %v2140
        %v2149 = vmul.f32 %v2148, %v2116
        %v2150 = vsub.f32 %v2118, %v2149
        %v2151 = vperm.slane %v2117, 0
        %v2152 = vmul.f32 %v1972, %v2151
        %v2153 = vmul.f32 %v1973, %v2151
        %v2154 = vmul.f32 %v1974, %v2151
        %v2155 = vmul.f32 %v1975, %v2151
        %v2156 = vmul.f32 %v1976, %v2151
        %v2157 = vmul.f32 %v1977, %v2151
        %v2158 = vmul.f32 %v1978, %v2151
        %v2159 = vmul.f32 %v1979, %v2151
        %v2161 = vperm.slane %v2150, 0
        %v2163 = vadd.f32 %v2152, %v2161
        %v2164 = vadd.f32 %v2153, %v2161
        %v2165 = vadd.f32 %v2154, %v2161
        %v2166 = vadd.f32 %v2155, %v2161
        %v2167 = vadd.f32 %v2156, %v2161
        %v2168 = vadd.f32 %v2157, %v2161
        %v2169 = vadd.f32 %v2158, %v2161
        %v2170 = vadd.f32 %v2159, %v2161
        %v2171 = vadd.f32 %v354, %v2163
        %v2172 = vadd.f32 %v355, %v2164
        %v2173 = vadd.f32 %v356, %v2165
        %v2174 = vadd.f32 %v357, %v2166
        %v2175 = vadd.f32 %v358, %v2167
        %v2176 = vadd.f32 %v359, %v2168
        %v2177 = vadd.f32 %v360, %v2169
        %v2178 = vadd.f32 %v361, %v2170
        %2179 = vst [vmem:[%s331] sm:$0xff] %v2171
        %2180 = vst [vmem:[%s331 + $0x8] sm:$0xff] %v2172
        %2181 = vst [vmem:[%s331 + $0x10] sm:$0xff] %v2173
        %2182 = vst [vmem:[%s331 + $0x18] sm:$0xff] %v2174
        %2183 = vst [vmem:[%s331 + $0x20] sm:$0xff] %v2175
        %2184 = vst [vmem:[%s331 + $0x28] sm:$0xff] %v2176
        %2185 = vst [vmem:[%s331 + $0x30] sm:$0xff] %v2177
        %2186 = vst [vmem:[%s331 + $0x38] sm:$0xff] %v2178
        %s2187 = sand.u32 %s185, 1
        %s2188 = scalar_lea.sflag [#allocation5], %s2187
        %s2189 = sand.u32 %s185, 1
        %s2190 = smul.addr %s2189, 64
        %s2191 = scalar_lea.vmem [#allocation9], %s2190
        // Predicated region
        $region61: #{tpu_custom_call.1} parent=47 // pred_check
          %p2192 = pneg %p195
        $region62: #{tpu_custom_call.1} parent=47 // pred_check_branch
          %2194 = sbr.rel (%p2192) target = $region64
        $region63: #{tpu_custom_call.1} parent=47 // pred_region
          %2196 = vsyncadd %s2188, 0
          %s2197 = smul.addr %s25, 8
          %s2198 = smul.addr %s2197, 8
          %s2199 = scalar_lea.hbm %s7, %s2198
          %s2200 = sshll.u32 %s2191, 4
          %s2201 = int_to_ptr.vmem [resolvable:$true] %s2200
          %s2202 = sshll.u32 %s2199, 4
          %s2203 = int_to_ptr.hbm [resolvable:$true] %s2202
          %2208 = dma.vmem_to_hbm [thread:$0]  %s2201, 1024, %s2203, %s2188, 128, 128, 8
        $region64: #{tpu_custom_call.1} parent=47 // pred_fallthru
          _
      $region48: #{tpu_custom_call.1} parent=5 // pred_fallthru
        _
      %p2209 = scmp.le.s32.totalorder 2, %s20
      // Predicated region
      $region65: #{tpu_custom_call.1} parent=5 // pred_check
        %p2210 = pneg %p2209
      $region66: #{tpu_custom_call.1} parent=5 // pred_check_branch
        %2212 = sbr.rel (%p2210) target = $region68
      $region67: #{tpu_custom_call.1} parent=5 // pred_region
        %s2213 = ssub.s32 %s20, 2
        // Predicated region
        $region69: #{tpu_custom_call.1} parent=67 // pred_check
          %p2214 = pneg %p201
        $region70: #{tpu_custom_call.1} parent=67 // pred_check_branch
          %2216 = sbr.rel (%p2214) target = $region72
        $region71: #{tpu_custom_call.1} parent=67 // pred_region
          %s2217 = sand.u32 %s186, 1
          %s2218 = scalar_lea.sflag [#allocation5], %s2217
          %s2219 = sand.u32 %s186, 1
          %s2220 = smul.addr %s2219, 64
          %s2221 = scalar_lea.vmem [#allocation9], %s2220
          %2223 = dma.done %s2218, 1024
        $region72: #{tpu_custom_call.1} parent=67 // pred_fallthru
          _
      $region68: #{tpu_custom_call.1} parent=5 // pred_fallthru
        _
    $region6: #{tpu_custom_call.1} parent=1 // loop_footer
      %s24 = sadd.s32 1, %s20
    $region7: #{tpu_custom_call.1} parent=1 // loop_footer_branch
      %19 = sbr.rel target = $region3
    $region8: #{tpu_custom_call.1} parent=1 // loop_exit
      _
    %2224 = vsyncpa [#allocation4], 1
    %s2225 = scalar_lea.sflag [#allocation4], 1
    %2226 = vsyncpa %s2225, 1
    %2227 = vsyncpa [#allocation7], 1
    %2228 = vsyncpa [#allocation5], 1
    %s2229 = scalar_lea.sflag [#allocation5], 1
    %2230 = vsyncpa %s2229, 1

</llo_original>
